<compile_context>
chip_gen: v7x
topology: tpu7x:2x2x1
jax: 0.10.0
libtpu: 0.0.40
codegen_flags: <defaults>
</compile_context>

<pallas_src>
import functools

import jax
import jax.numpy as jnp
from jax import lax
from jax.experimental import pallas as pl
from jax.experimental.pallas import tpu as pltpu

STOCK_POOL = 7

_DEFAULT_VMEM_CAP = 64 << 20            # assume the smallest (v7x) if unknown
_MAX_CHUNKS = 64                        # bound on the chunk-staging unroll


def _detect_vmem_capacity():
    """Physical per-core VMEM: 128 MiB on v5e/v6e, 64 MiB on v7x."""
    try:
        cap = int(pltpu.get_tpu_info().vmem_capacity_bytes)
        if cap > 0:
            return min(max(cap, 32 << 20), 128 << 20)
    except Exception:                   # non-TPU backend / API drift
        pass
    return _DEFAULT_VMEM_CAP


# ----------------------------- kernel bodies --------------------------------


def _finalize(sorted_x, sorted_i, bc_ref, idx_ref, G):
    """Masked winner/loser softmaxes over the descending-sorted row."""
    I = sorted_x.shape[-1]
    pos = lax.broadcasted_iota(jnp.int32, (1, I), 1)
    win_mask = pos < G
    lose_mask = pos >= (I - G)

    w_max = jnp.max(jnp.where(win_mask, sorted_x, -jnp.inf), axis=1,
                    keepdims=True)
    w_exp = jnp.where(win_mask, jnp.exp(sorted_x - w_max), 0.0)
    w_prop = w_exp * pl.reciprocal(jnp.sum(w_exp, axis=1, keepdims=True),
                                   approx=True)                 # EUP slot

    l_logit = 1.0 - sorted_x
    l_max = jnp.max(jnp.where(lose_mask, l_logit, -jnp.inf), axis=1,
                    keepdims=True)
    l_exp = jnp.where(lose_mask, jnp.exp(l_logit - l_max), 0.0)
    l_prop = l_exp * pl.reciprocal(jnp.sum(l_exp, axis=1, keepdims=True),
                                   approx=True)

    # win / lose masks are disjoint (I > 2G) and both props are already zero
    # outside their regions, so the concat is just a subtraction.
    bc_ref[...] = (w_prop - l_prop).astype(bc_ref.dtype)
    idx_ref[...] = (sorted_i + 0.5).astype(jnp.int32)


def _portfolio_kernel_single(x_ref, bc_ref, idx_ref, *, G):
    """One (TB, I) batch tile, single lane chunk (chunk == I): straight-line."""
    TB, I = x_ref.shape
    x = x_ref[...]                                     # f32 (wrapper upcasts)
    x_cmp = jnp.where(jnp.isnan(x), -jnp.inf, x)       # NaNs rank last

    row = lax.broadcasted_iota(jnp.int32, (I, I), 0)   # output / asset index
    col = lax.broadcasted_iota(jnp.int32, (I, I), 1)   # source index

    # rank[b,i] = #{j : x[b,j] > x[b,i] or (== and j < i)}  (stable descending)
    xi = x_cmp[:, :, None]                             # (TB, I, 1)
    xj = x_cmp[:, None, :]                             # (TB, 1, I)
    greater = jnp.logical_or(xj > xi,
                             jnp.logical_and(xj == xi, (col < row)[None]))
    rank = jnp.sum(greater.astype(jnp.int32), axis=2)  # (TB, I)

    # One-hot gather of sorted values + original indices (VPU select + reduce).
    onehot = rank[:, None, :] == row[None]             # (TB, I, I) bool
    colf = col[:1].astype(jnp.float32)                 # (1, I) = [0..I-1]
    sorted_x = jnp.sum(jnp.where(onehot, x[:, None, :], 0.0), axis=2)
    sorted_i = jnp.sum(jnp.where(onehot, colf[None], 0.0), axis=2)

    _finalize(sorted_x, sorted_i, bc_ref, idx_ref, G)


def _portfolio_kernel_chunked(x_ref, bc_ref, idx_ref, acc_v, acc_i, xch_s,
                              rankch_s, *, G, chunk):
    """One (TB, I) batch tile, asset axis processed in lane chunks.

    Deferred-reduce variant: per-chunk (TB, I, chunk) contributions accumulate
    elementwise into VMEM scratch; a single cross-lane reduce runs after each
    fori_loop.  Chunks are staged chunk-major so the loop only does
    leading-axis dynamic indexing.
    """
    TB, I = x_ref.shape
    n_chunks = I // chunk
    if n_chunks <= 4:
        unroll = True
    elif n_chunks % 2 == 0:
        unroll = 2
    else:
        unroll = False

    x = x_ref[...]                                     # (TB, I) f32
    x_cmp = jnp.where(jnp.isnan(x), -jnp.inf, x)       # NaNs rank last
    xi = x_cmp[:, :, None]                             # (TB, I, 1)

    # Stage x chunk-major: xch_s[c] = x[:, c*chunk:(c+1)*chunk].  Static copies
    # (O(TB*I) total); the fori_loop bodies then only index the leading axis.
    for c0 in range(n_chunks):
        xch_s[c0] = x[:, c0 * chunk:(c0 + 1) * chunk]

    # Loop-invariant iotas, hoisted once (JAX does not CSE broadcast_in_dim).
    row = lax.broadcasted_iota(jnp.int32, (I, chunk), 0)   # asset / rank idx
    col = lax.broadcasted_iota(jnp.int32, (I, chunk), 1)   # chunk-local idx

    # ---- pass 1: rank[b,i] = #{j : x[b,j] > x[b,i] or (== and j < i)} ------
    acc_v[...] = jnp.zeros_like(acc_v)

    def p1_body(c, carry):
        j0 = c * chunk
        xj_raw = xch_s[c]                              # (TB, chunk)
        xj = jnp.where(jnp.isnan(xj_raw), -jnp.inf, xj_raw)[:, None, :]
        tie = ((col + j0) < row)[None]                 # (1, I, chunk)
        greater = jnp.logical_or(xj > xi, jnp.logical_and(xj == xi, tie))
        acc_v[...] += greater.astype(jnp.float32)      # elementwise accumulate
        return carry

    lax.fori_loop(0, n_chunks, p1_body, 0, unroll=unroll)
    rank = jnp.sum(acc_v[...], axis=2).astype(jnp.int32)   # one XLU reduce

    # Stage rank chunk-major for pass 2 (same leading-axis indexing trick).
    for c0 in range(n_chunks):
        rankch_s[c0] = rank[:, c0 * chunk:(c0 + 1) * chunk]

    # ---- pass 2: one-hot gather of sorted values + original indices --------
    acc_v[...] = jnp.zeros_like(acc_v)
    acc_i[...] = jnp.zeros_like(acc_i)
    colf = col[:1].astype(jnp.float32)                 # (1, chunk)

    def p2_body(c, carry):
        onehot = rankch_s[c][:, None, :] == row[None]  # (TB, I, chunk) bool
        x_c = xch_s[c][:, None, :]                     # (TB, 1, chunk)
        idx_c = (colf + (c * chunk).astype(jnp.float32))[None]   # (1,1,chunk)
        acc_v[...] += jnp.where(onehot, x_c, 0.0)
        acc_i[...] += jnp.where(onehot, idx_c, 0.0)
        return carry

    lax.fori_loop(0, n_chunks, p2_body, 0, unroll=unroll)
    sorted_x = jnp.sum(acc_v[...], axis=2)             # one XLU reduce each
    sorted_i = jnp.sum(acc_i[...], axis=2)

    _finalize(sorted_x, sorted_i, bc_ref, idx_ref, G)


# ------------------------------ tile picking --------------------------------


def _pick_tiles(B, I, temp_budget, batch_tile=None, chunk=None):
    """Choose (batch tile TB, lane chunk C).

    Prefers the largest chunk (ideally C == I, single chunk) and then the
    largest batch tile whose live temporaries fit `temp_budget`.  TB is B
    (full extent) or a multiple of 8; when B >= 16, TB is capped so there are
    at least two batch tiles (both v7x TensorCores get work).
    """
    if chunk is not None:
        if I % chunk:
            raise ValueError(f"chunk={chunk} must divide I={I}")
        chunks = [chunk]
    else:
        chunks = [d for d in range(I, 0, -1) if I % d == 0 and I // d <= _MAX_CHUNKS]

    if batch_tile is not None:
        tbs = [batch_tile]
    else:
        tbs = []
        if B < 16:
            tbs.append(B)                         # full-extent block (legal)
            t = (B // 8) * 8
        else:
            t = ((((B + 1) // 2) + 7) // 8) * 8   # >= 2 batch tiles
        while t >= 8:
            if t < B and t not in tbs:
                tbs.append(t)
            t = ((t // 2) // 8) * 8
        if not tbs:
            tbs = [B]

    def fits(tb, c):
        coef = 6 if c == I else 7                 # chunked adds scratch accs
        return coef * tb * I * c * 4 + 32 * tb * I * 4 <= temp_budget

    for c in chunks:                              # biggest / lane-dense first
        for tb in tbs:                            # then biggest batch tile
            if fits(tb, c):
                return tb, c
    return tbs[-1], chunks[-1]


# --------------------------------- wrapper -----------------------------------


def portfolio_generator(x, G=STOCK_POOL, *, batch_tile=None, chunk=None):
    """JAX/Pallas equivalent of PortfolioGenerator.forward.

    x: (B, I) or (B, I, 1) float array.
    Returns (b_c, sorted_indices): (B, I) in x.dtype, (B, I) int32.
    (PyTorch returns int64 indices; int32 is used for TPU friendliness.)
    """
    if x.ndim == 3 and x.shape[-1] == 1:
        x = jnp.squeeze(x, axis=-1)
    if x.ndim != 2:
        raise ValueError(f"expected (B, I) or (B, I, 1), got {x.shape}")
    B, I = x.shape
    if I <= 2 * G:
        raise ValueError(
            f"len of configurable stocks:{2 * G} > available stocks:{I}")

    orig_dtype = x.dtype
    xf = x.astype(jnp.float32)          # f32 in kernel (sidesteps bf16 tiling)

    # Generation-aware VMEM sizing (128 MiB v5e/v6e vs 64 MiB v7x).
    vmem_cap = _detect_vmem_capacity()
    vmem_limit = max((vmem_cap * 3) // 4, 32 << 20)
    temp_budget = max(vmem_limit - (12 << 20), 16 << 20)

    tb, ck = _pick_tiles(B, I, temp_budget, batch_tile=batch_tile, chunk=chunk)
    nb = pl.cdiv(B, tb)
    n_chunks = I // ck

    if n_chunks == 1:
        kernel = functools.partial(_portfolio_kernel_single, G=G)
        scratch = []
    else:
        kernel = functools.partial(_portfolio_kernel_chunked, G=G, chunk=ck)
        scratch = [
            pltpu.VMEM((tb, I, ck), jnp.float32),        # count / value acc
            pltpu.VMEM((tb, I, ck), jnp.float32),        # index acc
            pltpu.VMEM((n_chunks, tb, ck), jnp.float32), # x, chunk-major
            pltpu.VMEM((n_chunks, tb, ck), jnp.int32),   # rank, chunk-major
        ]

    cost = pl.CostEstimate(                              # advisory hint
        flops=int(6 * B * I * I + 20 * B * I),
        transcendentals=int(2 * B * I),
        bytes_accessed=int(3 * B * I * 4))

    bc, idx = pl.pallas_call(
        kernel,
        out_shape=(
            jax.ShapeDtypeStruct((B, I), jnp.float32),
            jax.ShapeDtypeStruct((B, I), jnp.int32),
        ),
        grid=(nb,),
        in_specs=[pl.BlockSpec((tb, I), lambda b: (b, 0))],
        out_specs=(
            pl.BlockSpec((tb, I), lambda b: (b, 0)),
            pl.BlockSpec((tb, I), lambda b: (b, 0)),
        ),
        scratch_shapes=scratch,
        compiler_params=pltpu.CompilerParams(
            dimension_semantics=("parallel",),   # batch tiles are independent
            vmem_limit_bytes=int(vmem_limit)),
        cost_estimate=cost,
    )(xf)

    if orig_dtype != jnp.float32:
        bc = bc.astype(orig_dtype)
    return bc, idx


# ----------------------------------- demo -----------------------------------


if __name__ == "__main__":
    def reference(xs, G):
        srt = -jnp.sort(-xs, axis=-1)
        ridx = jnp.argsort(-xs, axis=-1).astype(jnp.int32)
        w = jax.nn.softmax(srt[:, :G], axis=-1)
        l = -jax.nn.softmax(1.0 - srt[:, -G:], axis=-1)
        zeros = jnp.zeros((xs.shape[0], xs.shape[1] - 2 * G), xs.dtype)
        return jnp.concatenate([w, zeros, l], axis=1), ridx

    key = jax.random.PRNGKey(0)
    k1, k2, k3 = jax.random.split(key, 3)

    # 1) module-sized demo: B=2, I=16 (> 2*G = 14), trailing singleton dim.
    x = jax.random.normal(k1, (2, 16, 1), dtype=jnp.float32)
    b_c, idx = portfolio_generator(x, G=STOCK_POOL)
    jax.block_until_ready((b_c, idx))
    ref_bc, ref_idx = reference(jnp.squeeze(x, -1), STOCK_POOL)
    assert jnp.allclose(b_c, ref_bc, atol=2e-3), "portfolio mismatch (demo)"
    assert jnp.array_equal(idx, ref_idx), "index mismatch (demo)"

    # 2) multi-step batch-tiled grid (2 grid steps, "parallel" batch axis).
    x2 = jax.random.normal(k2, (16, 16), dtype=jnp.float32)
    b_c2, idx2 = portfolio_generator(x2, G=STOCK_POOL, batch_tile=8)
    jax.block_until_ready((b_c2, idx2))
    ref_bc2, ref_idx2 = reference(x2, STOCK_POOL)
    assert jnp.allclose(b_c2, ref_bc2, atol=2e-3), "portfolio mismatch (tiled)"
    assert jnp.array_equal(idx2, ref_idx2), "index mismatch (tiled)"

    # 3) chunked / deferred-reduce path (two lane chunks of 8).
    b_c3, idx3 = portfolio_generator(x2, G=STOCK_POOL, chunk=8)
    jax.block_until_ready((b_c3, idx3))
    assert jnp.allclose(b_c3, ref_bc2, atol=2e-3), "portfolio mismatch (chunk8)"
    assert jnp.array_equal(idx3, ref_idx2), "index mismatch (chunk8)"

    # 4) lane-aligned chunked path with unrolled fori_loop (I=512, 4 chunks).
    x4 = jax.random.normal(k3, (8, 512), dtype=jnp.float32)
    b_c4, idx4 = portfolio_generator(x4, G=STOCK_POOL, chunk=128)
    jax.block_until_ready((b_c4, idx4))
    ref_bc4, ref_idx4 = reference(x4, STOCK_POOL)
    assert jnp.allclose(b_c4, ref_bc4, atol=2e-3), "portfolio mismatch (I=512)"
    assert jnp.array_equal(idx4, ref_idx4), "index mismatch (I=512)"

    print("KERNEL_OK")
</pallas_src>

<mosaic_0001>
module attributes {stable_mosaic.version = 11 : i64} {
  func.func @_portfolio_kernel_single(%arg0: i32, %arg1: memref<2x16xf32, #tpu.memory_space<vmem>>, %arg2: memref<2x16xf32, #tpu.memory_space<vmem>>, %arg3: memref<2x16xi32, #tpu.memory_space<vmem>>) attributes {dimension_semantics = [#tpu.dimension_semantics<parallel>], iteration_bounds = array<i64: 1>, scalar_prefetch = 0 : i64, scratch_operands = 0 : i64, tpu.core_type = #tpu.core_type<tc>, window_params = [{transform_indices = @transform_0, window_bounds = array<i64: 2, 16>}, {transform_indices = @transform_1, window_bounds = array<i64: 2, 16>}, {transform_indices = @transform_2, window_bounds = array<i64: 2, 16>}]} {
    %c0 = arith.constant 0 : index
    %c0_0 = arith.constant 0 : index
    %0 = vector.load %arg1[%c0, %c0_0] : memref<2x16xf32, #tpu.memory_space<vmem>>, vector<2x16xf32>
    %1 = arith.cmpf one, %0, %0 : vector<2x16xf32>
    %cst = arith.constant 0xFF800000 : f32
    %2 = vector.broadcast %cst : f32 to vector<2x16xf32>
    %3 = arith.select %1, %2, %0 : vector<2x16xi1>, vector<2x16xf32>
    %4 = tpu.iota {dimensions = array<i32: 0>} : vector<16x16xi32>
    %5 = tpu.iota {dimensions = array<i32: 1>} : vector<16x16xi32>
    %6 = vector.shape_cast %3 : vector<2x16xf32> to vector<2x16x1xf32>
    %7 = vector.shape_cast %3 : vector<2x16xf32> to vector<2x1x16xf32>
    %8 = vector.broadcast %7 : vector<2x1x16xf32> to vector<2x16x16xf32>
    %9 = vector.broadcast %6 : vector<2x16x1xf32> to vector<2x16x16xf32>
    %10 = arith.cmpf ogt, %8, %9 : vector<2x16x16xf32>
    %11 = vector.broadcast %7 : vector<2x1x16xf32> to vector<2x16x16xf32>
    %12 = vector.broadcast %6 : vector<2x16x1xf32> to vector<2x16x16xf32>
    %13 = arith.cmpf oeq, %11, %12 : vector<2x16x16xf32>
    %14 = arith.cmpi slt, %5, %4 : vector<16x16xi32>
    %15 = vector.shape_cast %14 : vector<16x16xi1> to vector<1x16x16xi1>
    %16 = vector.broadcast %15 : vector<1x16x16xi1> to vector<2x16x16xi1>
    %17 = arith.andi %13, %16 : vector<2x16x16xi1>
    %18 = arith.ori %10, %17 : vector<2x16x16xi1>
    %19 = arith.extui %18 : vector<2x16x16xi1> to vector<2x16x16xi32>
    %cst_1 = arith.constant dense<0> : vector<2x16xi32>
    %20 = vector.multi_reduction <add>, %19, %cst_1 [2] : vector<2x16x16xi32> to vector<2x16xi32>
    %21 = vector.shape_cast %20 : vector<2x16xi32> to vector<2x1x16xi32>
    %22 = vector.shape_cast %4 : vector<16x16xi32> to vector<1x16x16xi32>
    %23 = vector.broadcast %21 : vector<2x1x16xi32> to vector<2x16x16xi32>
    %24 = vector.broadcast %22 : vector<1x16x16xi32> to vector<2x16x16xi32>
    %25 = arith.cmpi eq, %23, %24 : vector<2x16x16xi32>
    %26 = vector.extract_strided_slice %5 {offsets = [0, 0], sizes = [1, 16], strides = [1, 1]} : vector<16x16xi32> to vector<1x16xi32>
    %27 = arith.sitofp %26 : vector<1x16xi32> to vector<1x16xf32>
    %28 = vector.shape_cast %0 : vector<2x16xf32> to vector<2x1x16xf32>
    %cst_2 = arith.constant 0.000000e+00 : f32
    %29 = vector.shape_cast %28 : vector<2x1x16xf32> to vector<2x1x16xf32>
    %30 = vector.broadcast %29 : vector<2x1x16xf32> to vector<2x16x16xf32>
    %31 = vector.broadcast %cst_2 : f32 to vector<2x16x16xf32>
    %32 = arith.select %25, %30, %31 : vector<2x16x16xi1>, vector<2x16x16xf32>
    %cst_3 = arith.constant dense<0.000000e+00> : vector<2x16xf32>
    %33 = vector.multi_reduction <add>, %32, %cst_3 [2] : vector<2x16x16xf32> to vector<2x16xf32>
    %34 = vector.shape_cast %27 : vector<1x16xf32> to vector<1x1x16xf32>
    %cst_4 = arith.constant 0.000000e+00 : f32
    %35 = vector.shape_cast %34 : vector<1x1x16xf32> to vector<1x1x16xf32>
    %36 = vector.broadcast %35 : vector<1x1x16xf32> to vector<2x16x16xf32>
    %37 = vector.broadcast %cst_4 : f32 to vector<2x16x16xf32>
    %38 = arith.select %25, %36, %37 : vector<2x16x16xi1>, vector<2x16x16xf32>
    %cst_5 = arith.constant dense<0.000000e+00> : vector<2x16xf32>
    %39 = vector.multi_reduction <add>, %38, %cst_5 [2] : vector<2x16x16xf32> to vector<2x16xf32>
    %40 = tpu.iota {dimensions = array<i32: 1>} : vector<1x16xi32>
    %c7_i32 = arith.constant 7 : i32
    %41 = vector.broadcast %c7_i32 : i32 to vector<1x16xi32>
    %42 = arith.cmpi slt, %40, %41 : vector<1x16xi32>
    %c9_i32 = arith.constant 9 : i32
    %43 = vector.broadcast %c9_i32 : i32 to vector<1x16xi32>
    %44 = arith.cmpi sge, %40, %43 : vector<1x16xi32>
    %cst_6 = arith.constant 0xFF800000 : f32
    %45 = vector.shape_cast %42 : vector<1x16xi1> to vector<1x16xi1>
    %46 = vector.broadcast %45 : vector<1x16xi1> to vector<2x16xi1>
    %47 = vector.broadcast %cst_6 : f32 to vector<2x16xf32>
    %48 = arith.select %46, %33, %47 : vector<2x16xi1>, vector<2x16xf32>
    %cst_7 = arith.constant dense<0xFF800000> : vector<2xf32>
    %49 = vector.multi_reduction <maximumf>, %48, %cst_7 [1] : vector<2x16xf32> to vector<2xf32>
    %50 = vector.shape_cast %49 : vector<2xf32> to vector<2x1xf32>
    %51 = vector.broadcast %50 : vector<2x1xf32> to vector<2x16xf32>
    %52 = arith.subf %33, %51 : vector<2x16xf32>
    %53 = math.exp %52 : vector<2x16xf32>
    %cst_8 = arith.constant 0.000000e+00 : f32
    %54 = vector.shape_cast %42 : vector<1x16xi1> to vector<1x16xi1>
    %55 = vector.broadcast %54 : vector<1x16xi1> to vector<2x16xi1>
    %56 = vector.broadcast %cst_8 : f32 to vector<2x16xf32>
    %57 = arith.select %55, %53, %56 : vector<2x16xi1>, vector<2x16xf32>
    %cst_9 = arith.constant dense<0.000000e+00> : vector<2xf32>
    %58 = vector.multi_reduction <add>, %57, %cst_9 [1] : vector<2x16xf32> to vector<2xf32>
    %59 = vector.shape_cast %58 : vector<2xf32> to vector<2x1xf32>
    %60 = tpu.reciprocal %59 {approx = true} : vector<2x1xf32> -> vector<2x1xf32>
    %61 = vector.broadcast %60 : vector<2x1xf32> to vector<2x16xf32>
    %62 = arith.mulf %57, %61 : vector<2x16xf32>
    %cst_10 = arith.constant 1.000000e+00 : f32
    %63 = vector.broadcast %cst_10 : f32 to vector<2x16xf32>
    %64 = arith.subf %63, %33 : vector<2x16xf32>
    %cst_11 = arith.constant 0xFF800000 : f32
    %65 = vector.shape_cast %44 : vector<1x16xi1> to vector<1x16xi1>
    %66 = vector.broadcast %65 : vector<1x16xi1> to vector<2x16xi1>
    %67 = vector.broadcast %cst_11 : f32 to vector<2x16xf32>
    %68 = arith.select %66, %64, %67 : vector<2x16xi1>, vector<2x16xf32>
    %cst_12 = arith.constant dense<0xFF800000> : vector<2xf32>
    %69 = vector.multi_reduction <maximumf>, %68, %cst_12 [1] : vector<2x16xf32> to vector<2xf32>
    %70 = vector.shape_cast %69 : vector<2xf32> to vector<2x1xf32>
    %71 = vector.broadcast %70 : vector<2x1xf32> to vector<2x16xf32>
    %72 = arith.subf %64, %71 : vector<2x16xf32>
    %73 = math.exp %72 : vector<2x16xf32>
    %cst_13 = arith.constant 0.000000e+00 : f32
    %74 = vector.shape_cast %44 : vector<1x16xi1> to vector<1x16xi1>
    %75 = vector.broadcast %74 : vector<1x16xi1> to vector<2x16xi1>
    %76 = vector.broadcast %cst_13 : f32 to vector<2x16xf32>
    %77 = arith.select %75, %73, %76 : vector<2x16xi1>, vector<2x16xf32>
    %cst_14 = arith.constant dense<0.000000e+00> : vector<2xf32>
    %78 = vector.multi_reduction <add>, %77, %cst_14 [1] : vector<2x16xf32> to vector<2xf32>
    %79 = vector.shape_cast %78 : vector<2xf32> to vector<2x1xf32>
    %80 = tpu.reciprocal %79 {approx = true} : vector<2x1xf32> -> vector<2x1xf32>
    %81 = vector.broadcast %80 : vector<2x1xf32> to vector<2x16xf32>
    %82 = arith.mulf %77, %81 : vector<2x16xf32>
    %83 = arith.subf %62, %82 : vector<2x16xf32>
    %c0_15 = arith.constant 0 : index
    %c0_16 = arith.constant 0 : index
    %84 = vector.load %arg2[%c0_15, %c0_16] : memref<2x16xf32, #tpu.memory_space<vmem>>, vector<2x16xf32>
    tpu.vector_store %arg2[%c0_15, %c0_16], %83 {strides = array<i32>} : memref<2x16xf32, #tpu.memory_space<vmem>>, vector<2x16xf32>,
    %cst_17 = arith.constant 5.000000e-01 : f32
    %85 = vector.broadcast %cst_17 : f32 to vector<2x16xf32>
    %86 = arith.addf %39, %85 : vector<2x16xf32>
    %87 = arith.fptosi %86 : vector<2x16xf32> to vector<2x16xi32>
    %c0_18 = arith.constant 0 : index
    %c0_19 = arith.constant 0 : index
    %88 = vector.load %arg3[%c0_18, %c0_19] : memref<2x16xi32, #tpu.memory_space<vmem>>, vector<2x16xi32>
    tpu.vector_store %arg3[%c0_18, %c0_19], %87 {strides = array<i32>} : memref<2x16xi32, #tpu.memory_space<vmem>>, vector<2x16xi32>,
    return
  }
  func.func @transform_0(%arg0: i32) -> (i32, i32) {
    %c0_i32 = arith.constant 0 : i32
    %c0_i32_0 = arith.constant 0 : i32
    return %arg0, %c0_i32 : i32, i32
  }
  func.func @transform_1(%arg0: i32) -> (i32, i32) {
    %c0_i32 = arith.constant 0 : i32
    %c0_i32_0 = arith.constant 0 : i32
    return %arg0, %c0_i32 : i32, i32
  }
  func.func @transform_2(%arg0: i32) -> (i32, i32) {
    %c0_i32 = arith.constant 0 : i32
    %c0_i32_0 = arith.constant 0 : i32
    return %arg0, %c0_i32 : i32, i32
  }
}

</mosaic_0001>

<llo_original>
// kernel: tpu_custom_call.1
$region0: #{tpu_custom_call.1}
  #allocation0 [shape = 'u32[]', space=smem, size = 0x4, offset = 0x4, fixed_abs, tag = 'smem constant byte address 0x4 - core index']
  #allocation1 [shape = 'u32[144,128]{1,0:T(1,128)}', space=vmem, size = 0x12000, scoped, tag = 'internal scratch']
  %s0 = inlined_call_operand.hbm [shape: f32[2,16], index: 0, kind: input, shape index: {}]
  %s1 = inlined_call_operand.hbm [shape: f32[2,16], index: 1, kind: output, shape index: {0}]
  %s2 = inlined_call_operand.hbm [shape: s32[2,16], index: 2, kind: output, shape index: {1}]
  %3 = xla_tuple %s1, %s2
  %s4 = sld [smem:[#allocation0]]
  $region26: #{tpu_custom_call.1} parent=0
    _
  %s6 = ssub.s32 1, %s4
  %s7 = scalar_select 0, %s6, %s4
  $region1: #{tpu_custom_call.1} parent=0
    #allocation2 [shape = 'u8[1024]{0}', space=vmem, size = 0x400, scoped, tag = 'input window, operand 0, single buffered']
    #allocation3 [shape = 's32[1]{0}', space=sflag, size = 0x4, scoped, tag = 'scoped memory for tpu_custom_call.1']
    #allocation4 [shape = 's32[1]{0}', space=sflag, size = 0x4, scoped, tag = 'scoped memory for tpu_custom_call.1']
    #allocation5 [shape = 'u8[1024]{0}', space=vmem, size = 0x400, scoped, tag = 'output window, operand 0, single buffered']
    #allocation6 [shape = 'u8[1024]{0}', space=vmem, size = 0x400, scoped, tag = 'output window, operand 1, single buffered']
    #allocation7 [shape = 's32[1]{0}', space=sflag, size = 0x4, scoped, tag = 'scoped memory for tpu_custom_call.1']
    %8 = vsyncpa [#allocation3], 0
    %9 = vsyncpa [#allocation4], 0
    %10 = vsyncpa [#allocation7], 0
    // Predicated region
    $region2: #{tpu_custom_call.1} parent=1 // pred_check
      _
    $region3: #{tpu_custom_call.1} parent=1 // pred_check_branch
      %12 = sbr.rel (0) target = $region5
    $region4: #{tpu_custom_call.1} parent=1 // pred_region
      %s14 = ssub.s32 32, 32
      %15 = vsyncadd [#allocation3], %s14
      %s17 = sshll.u32 [#allocation2], 4
      %s18 = int_to_ptr.vmem [resolvable:$true] %s17
      %20 = dma.hbm_to_vmem [thread:$0]  %s0, 32, %s18, [#allocation3]
    $region5: #{tpu_custom_call.1} parent=1 // pred_fallthru
      _
    // Predicated region
    $region6: #{tpu_custom_call.1} parent=1 // pred_check
      _
    $region7: #{tpu_custom_call.1} parent=1 // pred_check_branch
      %22 = sbr.rel (0) target = $region9
    $region8: #{tpu_custom_call.1} parent=1 // pred_region
      %23 = dma.done [#allocation3], 32
    $region9: #{tpu_custom_call.1} parent=1 // pred_fallthru
      _
    %v24 = vld [vmem:[#allocation2] sm:$0x3]
    %vm25 = vcmp.ne.f32.partialorder %v24, %v24
    %v26 = vsel %vm25, -inf, %v24
    %v27 = vlaneseq
    %v28 = vshrl.u32 %v27, 7
    %v29 = vadd.s32 %v28, 8
    %v30 = vlaneseq
    %v31 = vand.u32 %v30, 127
    %v32 = vlaneseq
    %v33 = vshrl.u32 %v32, 7
    %v34 = vsub.s32 0, %v33
    %v35 = vrot.slane %v26, %v34
    %37 = vbcast.lane.b32.xlu0 %v35, 256
    %v38 = vpop.permute.xlu0 %37
    %s40 = sor.u32 256, 8
    %41 = vbcast.lane.b32.xlu0 %v35, %s40
    %v42 = vpop.permute.xlu0 %41
    %v43 = vlaneseq
    %v44 = vshrl.u32 %v43, 7
    %v45 = vsub.s32 1, %v44
    %v46 = vrot.slane %v26, %v45
    %48 = vbcast.lane.b32.xlu0 %v46, 256
    %v49 = vpop.permute.xlu0 %48
    %s51 = sor.u32 256, 8
    %52 = vbcast.lane.b32.xlu0 %v46, %s51
    %v53 = vpop.permute.xlu0 %52
    %v56 = vunpack.c.l.s4 1966171168
    %v57 = vunpack.c.0.s8 %v56
    %v58 = vlaneseq
    %v59 = vshrl.u32 %v58, 7
    %v60 = vsub.s32 %v57, %v59
    %v61 = vrot.slane %v26, %v60
    %v62 = vcombine.high %v61, %v61
    %v64 = vunpack.c.l.s4 1966171168
    %v65 = vunpack.c.0.s8 %v64
    %v66 = vlaneseq
    %v67 = vshrl.u32 %v66, 7
    %v68 = vsub.s32 %v65, %v67
    %v69 = vrot.slane %v61, %v68
    %v71 = vunpack.c.l.s4 1966171168
    %v72 = vunpack.c.0.s8 %v71
    %v73 = vlaneseq
    %v74 = vshrl.u32 %v73, 7
    %v75 = vsub.s32 %v72, %v74
    %v76 = vrot.slane %v62, %v75
    %v77 = vlaneseq
    %v78 = vshrl.u32 %v77, 7
    %v79 = vsub.s32 0, %v78
    %v80 = vrot.slane %v69, %v79
    %v81 = vlaneseq
    %v82 = vshrl.u32 %v81, 7
    %v83 = vsub.s32 0, %v82
    %v84 = vrot.slane %v76, %v83
    %vm87 = vcmp.gt.f32.partialorder %v80, %v38
    %vm88 = vcmp.gt.f32.partialorder %v80, %v42
    %vm89 = vcmp.gt.f32.partialorder %v84, %v49
    %vm90 = vcmp.gt.f32.partialorder %v84, %v53
    %vm91 = vcmp.eq.f32.partialorder %v80, %v38
    %vm92 = vcmp.eq.f32.partialorder %v80, %v42
    %vm93 = vcmp.eq.f32.partialorder %v84, %v49
    %vm94 = vcmp.eq.f32.partialorder %v84, %v53
    %vm95 = vcmp.lt.s32.totalorder %v31, %v28
    %vm96 = vcmp.lt.s32.totalorder %v31, %v29
    %v97 = vsel %vm95, 1, 0
    %v98 = vsel %vm96, 1, 0
    %vm99 = vcmp.eq.s32.totalorder %v97, 1
    %vm100 = vcmp.eq.s32.totalorder %v98, 1
    %vm101 = vmand %vm91, %vm99
    %vm102 = vmand %vm92, %vm100
    %vm103 = vmand %vm93, %vm99
    %vm104 = vmand %vm94, %vm100
    %vm105 = vmor %vm87, %vm101
    %vm106 = vmor %vm88, %vm102
    %vm107 = vmor %vm89, %vm103
    %vm108 = vmor %vm90, %vm104
    %v109 = vsel %vm105, 1, 0
    %v110 = vsel %vm106, 1, 0
    %v111 = vsel %vm107, 1, 0
    %v112 = vsel %vm108, 1, 0
    %vm113 = vcmask 130048
    %v114 = vsel %vm113, %v109, 0
    %v115 = vand.u32 %v114, 65535
    %v116 = vshrl.u32 %v114, 16
    %v117 = vcvt.s32.f32 %v115
    %v118 = vcvt.s32.f32 %v116
    %119 = vadd.xlane.f32.xlu0 %v117
    %v120 = vpop.xlane.xlu0 %119
    %121 = vadd.xlane.f32.xlu0 %v118
    %v122 = vpop.xlane.xlu0 %121
    %v123 = vcvt.f32.s32 %v120
    %v124 = vcvt.f32.s32 %v122
    %v125 = vshll.u32 %v124, 16
    %v126 = vadd.s32 %v125, %v123
    %v127 = vsel %vm113, %v110, 0
    %v128 = vand.u32 %v127, 65535
    %v129 = vshrl.u32 %v127, 16
    %v130 = vcvt.s32.f32 %v128
    %v131 = vcvt.s32.f32 %v129
    %132 = vadd.xlane.f32.xlu0 %v130
    %v133 = vpop.xlane.xlu0 %132
    %134 = vadd.xlane.f32.xlu0 %v131
    %v135 = vpop.xlane.xlu0 %134
    %v136 = vcvt.f32.s32 %v133
    %v137 = vcvt.f32.s32 %v135
    %v138 = vshll.u32 %v137, 16
    %v139 = vadd.s32 %v138, %v136
    %v140 = vsel %vm113, %v111, 0
    %v141 = vand.u32 %v140, 65535
    %v142 = vshrl.u32 %v140, 16
    %v143 = vcvt.s32.f32 %v141
    %v144 = vcvt.s32.f32 %v142
    %145 = vadd.xlane.f32.xlu0 %v143
    %v146 = vpop.xlane.xlu0 %145
    %147 = vadd.xlane.f32.xlu0 %v144
    %v148 = vpop.xlane.xlu0 %147
    %v149 = vcvt.f32.s32 %v146
    %v150 = vcvt.f32.s32 %v148
    %v151 = vshll.u32 %v150, 16
    %v152 = vadd.s32 %v151, %v149
    %v153 = vsel %vm113, %v112, 0
    %v154 = vand.u32 %v153, 65535
    %v155 = vshrl.u32 %v153, 16
    %v156 = vcvt.s32.f32 %v154
    %v157 = vcvt.s32.f32 %v155
    %158 = vadd.xlane.f32.xlu0 %v156
    %v159 = vpop.xlane.xlu0 %158
    %160 = vadd.xlane.f32.xlu0 %v157
    %v161 = vpop.xlane.xlu0 %160
    %v162 = vcvt.f32.s32 %v159
    %v163 = vcvt.f32.s32 %v161
    %v164 = vshll.u32 %v163, 16
    %v165 = vadd.s32 %v164, %v162
    %v166 = vlaneseq
    %v167 = vshrl.u32 %v166, 7
    %v168 = vsub.s32 0, %v167
    %v169 = vrot.slane %v28, %v168
    %v170 = vlaneseq
    %v171 = vshrl.u32 %v170, 7
    %v172 = vsub.s32 1, %v171
    %v173 = vrot.slane %v28, %v172
    %v174 = vlaneseq
    %v175 = vshrl.u32 %v174, 7
    %v176 = vsub.s32 2, %v175
    %v177 = vrot.slane %v28, %v176
    %v178 = vlaneseq
    %v179 = vshrl.u32 %v178, 7
    %v180 = vsub.s32 3, %v179
    %v181 = vrot.slane %v28, %v180
    %v182 = vlaneseq
    %v183 = vshrl.u32 %v182, 7
    %v184 = vsub.s32 4, %v183
    %v185 = vrot.slane %v28, %v184
    %v186 = vlaneseq
    %v187 = vshrl.u32 %v186, 7
    %v188 = vsub.s32 5, %v187
    %v189 = vrot.slane %v28, %v188
    %v190 = vlaneseq
    %v191 = vshrl.u32 %v190, 7
    %v192 = vsub.s32 6, %v191
    %v193 = vrot.slane %v28, %v192
    %v194 = vlaneseq
    %v195 = vshrl.u32 %v194, 7
    %v196 = vsub.s32 7, %v195
    %v197 = vrot.slane %v28, %v196
    %v198 = vlaneseq
    %v199 = vshrl.u32 %v198, 7
    %v200 = vsub.s32 0, %v199
    %v201 = vrot.slane %v29, %v200
    %v202 = vlaneseq
    %v203 = vshrl.u32 %v202, 7
    %v204 = vsub.s32 1, %v203
    %v205 = vrot.slane %v29, %v204
    %v206 = vlaneseq
    %v207 = vshrl.u32 %v206, 7
    %v208 = vsub.s32 2, %v207
    %v209 = vrot.slane %v29, %v208
    %v210 = vlaneseq
    %v211 = vshrl.u32 %v210, 7
    %v212 = vsub.s32 3, %v211
    %v213 = vrot.slane %v29, %v212
    %v214 = vlaneseq
    %v215 = vshrl.u32 %v214, 7
    %v216 = vsub.s32 4, %v215
    %v217 = vrot.slane %v29, %v216
    %v218 = vlaneseq
    %v219 = vshrl.u32 %v218, 7
    %v220 = vsub.s32 5, %v219
    %v221 = vrot.slane %v29, %v220
    %v222 = vlaneseq
    %v223 = vshrl.u32 %v222, 7
    %v224 = vsub.s32 6, %v223
    %v225 = vrot.slane %v29, %v224
    %v226 = vlaneseq
    %v227 = vshrl.u32 %v226, 7
    %v228 = vsub.s32 7, %v227
    %v229 = vrot.slane %v29, %v228
    %vm230 = vcmp.eq.s32.totalorder %v126, %v169
    %vm231 = vcmp.eq.s32.totalorder %v139, %v169
    %vm232 = vcmp.eq.s32.totalorder %v126, %v173
    %vm233 = vcmp.eq.s32.totalorder %v139, %v173
    %vm234 = vcmp.eq.s32.totalorder %v126, %v177
    %vm235 = vcmp.eq.s32.totalorder %v139, %v177
    %vm236 = vcmp.eq.s32.totalorder %v126, %v181
    %vm237 = vcmp.eq.s32.totalorder %v139, %v181
    %vm238 = vcmp.eq.s32.totalorder %v126, %v185
    %vm239 = vcmp.eq.s32.totalorder %v139, %v185
    %vm240 = vcmp.eq.s32.totalorder %v126, %v189
    %vm241 = vcmp.eq.s32.totalorder %v139, %v189
    %vm242 = vcmp.eq.s32.totalorder %v126, %v193
    %vm243 = vcmp.eq.s32.totalorder %v139, %v193
    %vm244 = vcmp.eq.s32.totalorder %v126, %v197
    %vm245 = vcmp.eq.s32.totalorder %v139, %v197
    %vm246 = vcmp.eq.s32.totalorder %v126, %v201
    %vm247 = vcmp.eq.s32.totalorder %v139, %v201
    %vm248 = vcmp.eq.s32.totalorder %v126, %v205
    %vm249 = vcmp.eq.s32.totalorder %v139, %v205
    %vm250 = vcmp.eq.s32.totalorder %v126, %v209
    %vm251 = vcmp.eq.s32.totalorder %v139, %v209
    %vm252 = vcmp.eq.s32.totalorder %v126, %v213
    %vm253 = vcmp.eq.s32.totalorder %v139, %v213
    %vm254 = vcmp.eq.s32.totalorder %v126, %v217
    %vm255 = vcmp.eq.s32.totalorder %v139, %v217
    %vm256 = vcmp.eq.s32.totalorder %v126, %v221
    %vm257 = vcmp.eq.s32.totalorder %v139, %v221
    %vm258 = vcmp.eq.s32.totalorder %v126, %v225
    %vm259 = vcmp.eq.s32.totalorder %v139, %v225
    %vm260 = vcmp.eq.s32.totalorder %v126, %v229
    %vm261 = vcmp.eq.s32.totalorder %v139, %v229
    %vm262 = vcmp.eq.s32.totalorder %v152, %v169
    %vm263 = vcmp.eq.s32.totalorder %v165, %v169
    %vm264 = vcmp.eq.s32.totalorder %v152, %v173
    %vm265 = vcmp.eq.s32.totalorder %v165, %v173
    %vm266 = vcmp.eq.s32.totalorder %v152, %v177
    %vm267 = vcmp.eq.s32.totalorder %v165, %v177
    %vm268 = vcmp.eq.s32.totalorder %v152, %v181
    %vm269 = vcmp.eq.s32.totalorder %v165, %v181
    %vm270 = vcmp.eq.s32.totalorder %v152, %v185
    %vm271 = vcmp.eq.s32.totalorder %v165, %v185
    %vm272 = vcmp.eq.s32.totalorder %v152, %v189
    %vm273 = vcmp.eq.s32.totalorder %v165, %v189
    %vm274 = vcmp.eq.s32.totalorder %v152, %v193
    %vm275 = vcmp.eq.s32.totalorder %v165, %v193
    %vm276 = vcmp.eq.s32.totalorder %v152, %v197
    %vm277 = vcmp.eq.s32.totalorder %v165, %v197
    %vm278 = vcmp.eq.s32.totalorder %v152, %v201
    %vm279 = vcmp.eq.s32.totalorder %v165, %v201
    %vm280 = vcmp.eq.s32.totalorder %v152, %v205
    %vm281 = vcmp.eq.s32.totalorder %v165, %v205
    %vm282 = vcmp.eq.s32.totalorder %v152, %v209
    %vm283 = vcmp.eq.s32.totalorder %v165, %v209
    %vm284 = vcmp.eq.s32.totalorder %v152, %v213
    %vm285 = vcmp.eq.s32.totalorder %v165, %v213
    %vm286 = vcmp.eq.s32.totalorder %v152, %v217
    %vm287 = vcmp.eq.s32.totalorder %v165, %v217
    %vm288 = vcmp.eq.s32.totalorder %v152, %v221
    %vm289 = vcmp.eq.s32.totalorder %v165, %v221
    %vm290 = vcmp.eq.s32.totalorder %v152, %v225
    %vm291 = vcmp.eq.s32.totalorder %v165, %v225
    %vm292 = vcmp.eq.s32.totalorder %v152, %v229
    %vm293 = vcmp.eq.s32.totalorder %v165, %v229
    %v294 = vcvt.s32.f32 %v31
    %v297 = vunpack.c.l.s4 1966171168
    %v298 = vunpack.c.0.s8 %v297
    %v299 = vlaneseq
    %v300 = vshrl.u32 %v299, 7
    %v301 = vsub.s32 %v298, %v300
    %v302 = vrot.slane %v24, %v301
    %v303 = vcombine.high %v302, %v302
    %v305 = vunpack.c.l.s4 1966171168
    %v306 = vunpack.c.0.s8 %v305
    %v307 = vlaneseq
    %v308 = vshrl.u32 %v307, 7
    %v309 = vsub.s32 %v306, %v308
    %v310 = vrot.slane %v302, %v309
    %v312 = vunpack.c.l.s4 1966171168
    %v313 = vunpack.c.0.s8 %v312
    %v314 = vlaneseq
    %v315 = vshrl.u32 %v314, 7
    %v316 = vsub.s32 %v313, %v315
    %v317 = vrot.slane %v303, %v316
    %v318 = vlaneseq
    %v319 = vshrl.u32 %v318, 7
    %v320 = vsub.s32 0, %v319
    %v321 = vrot.slane %v310, %v320
    %v322 = vlaneseq
    %v323 = vshrl.u32 %v322, 7
    %v324 = vsub.s32 0, %v323
    %v325 = vrot.slane %v317, %v324
    %327 = vbcast.lane.b32.xlu0 %v321, 256
    %v328 = vpop.permute.xlu0 %327
    %s330 = sor.u32 256, 8
    %331 = vbcast.lane.b32.xlu0 %v321, %s330
    %v332 = vpop.permute.xlu0 %331
    %334 = vbcast.lane.b32.xlu0 %v325, 256
    %v335 = vpop.permute.xlu0 %334
    %s337 = sor.u32 256, 8
    %338 = vbcast.lane.b32.xlu0 %v325, %s337
    %v339 = vpop.permute.xlu0 %338
    %v344 = vsel %vm230, %v328, 0.0
    %v345 = vsel %vm231, %v332, 0.0
    %v346 = vsel %vm232, %v328, 0.0
    %v347 = vsel %vm233, %v332, 0.0
    %v348 = vsel %vm234, %v328, 0.0
    %v349 = vsel %vm235, %v332, 0.0
    %v350 = vsel %vm236, %v328, 0.0
    %v351 = vsel %vm237, %v332, 0.0
    %v352 = vsel %vm238, %v328, 0.0
    %v353 = vsel %vm239, %v332, 0.0
    %v354 = vsel %vm240, %v328, 0.0
    %v355 = vsel %vm241, %v332, 0.0
    %v356 = vsel %vm242, %v328, 0.0
    %v357 = vsel %vm243, %v332, 0.0
    %v358 = vsel %vm244, %v328, 0.0
    %v359 = vsel %vm245, %v332, 0.0
    %v360 = vsel %vm246, %v328, 0.0
    %v361 = vsel %vm247, %v332, 0.0
    %v362 = vsel %vm248, %v328, 0.0
    %v363 = vsel %vm249, %v332, 0.0
    %v364 = vsel %vm250, %v328, 0.0
    %v365 = vsel %vm251, %v332, 0.0
    %v366 = vsel %vm252, %v328, 0.0
    %v367 = vsel %vm253, %v332, 0.0
    %v368 = vsel %vm254, %v328, 0.0
    %v369 = vsel %vm255, %v332, 0.0
    %v370 = vsel %vm256, %v328, 0.0
    %v371 = vsel %vm257, %v332, 0.0
    %v372 = vsel %vm258, %v328, 0.0
    %v373 = vsel %vm259, %v332, 0.0
    %v374 = vsel %vm260, %v328, 0.0
    %v375 = vsel %vm261, %v332, 0.0
    %v376 = vsel %vm262, %v335, 0.0
    %v377 = vsel %vm263, %v339, 0.0
    %v378 = vsel %vm264, %v335, 0.0
    %v379 = vsel %vm265, %v339, 0.0
    %v380 = vsel %vm266, %v335, 0.0
    %v381 = vsel %vm267, %v339, 0.0
    %v382 = vsel %vm268, %v335, 0.0
    %v383 = vsel %vm269, %v339, 0.0
    %v384 = vsel %vm270, %v335, 0.0
    %v385 = vsel %vm271, %v339, 0.0
    %v386 = vsel %vm272, %v335, 0.0
    %v387 = vsel %vm273, %v339, 0.0
    %v388 = vsel %vm274, %v335, 0.0
    %v389 = vsel %vm275, %v339, 0.0
    %v390 = vsel %vm276, %v335, 0.0
    %v391 = vsel %vm277, %v339, 0.0
    %v392 = vsel %vm278, %v335, 0.0
    %v393 = vsel %vm279, %v339, 0.0
    %v394 = vsel %vm280, %v335, 0.0
    %v395 = vsel %vm281, %v339, 0.0
    %v396 = vsel %vm282, %v335, 0.0
    %v397 = vsel %vm283, %v339, 0.0
    %v398 = vsel %vm284, %v335, 0.0
    %v399 = vsel %vm285, %v339, 0.0
    %v400 = vsel %vm286, %v335, 0.0
    %v401 = vsel %vm287, %v339, 0.0
    %v402 = vsel %vm288, %v335, 0.0
    %v403 = vsel %vm289, %v339, 0.0
    %v404 = vsel %vm290, %v335, 0.0
    %v405 = vsel %vm291, %v339, 0.0
    %v406 = vsel %vm292, %v335, 0.0
    %v407 = vsel %vm293, %v339, 0.0
    %472 = vset.pattern.permute.xlu0 0
    %473 = vperm.xlu0 %472, %v344
    %v474 = vpop.permute.xlu0 %473
    %475 = vset.pattern.permute.xlu0 0
    %476 = vperm.xlu0 %475, %v345
    %v477 = vpop.permute.xlu0 %476
    %478 = vset.pattern.permute.xlu0 0
    %479 = vperm.xlu0 %478, %v346
    %v480 = vpop.permute.xlu0 %479
    %481 = vset.pattern.permute.xlu0 0
    %482 = vperm.xlu0 %481, %v347
    %v483 = vpop.permute.xlu0 %482
    %484 = vset.pattern.permute.xlu0 0
    %485 = vperm.xlu0 %484, %v348
    %v486 = vpop.permute.xlu0 %485
    %487 = vset.pattern.permute.xlu0 0
    %488 = vperm.xlu0 %487, %v349
    %v489 = vpop.permute.xlu0 %488
    %490 = vset.pattern.permute.xlu0 0
    %491 = vperm.xlu0 %490, %v350
    %v492 = vpop.permute.xlu0 %491
    %493 = vset.pattern.permute.xlu0 0
    %494 = vperm.xlu0 %493, %v351
    %v495 = vpop.permute.xlu0 %494
    %496 = vset.pattern.permute.xlu0 0
    %497 = vperm.xlu0 %496, %v352
    %v498 = vpop.permute.xlu0 %497
    %499 = vset.pattern.permute.xlu0 0
    %500 = vperm.xlu0 %499, %v353
    %v501 = vpop.permute.xlu0 %500
    %502 = vset.pattern.permute.xlu0 0
    %503 = vperm.xlu0 %502, %v354
    %v504 = vpop.permute.xlu0 %503
    %505 = vset.pattern.permute.xlu0 0
    %506 = vperm.xlu0 %505, %v355
    %v507 = vpop.permute.xlu0 %506
    %508 = vset.pattern.permute.xlu0 0
    %509 = vperm.xlu0 %508, %v356
    %v510 = vpop.permute.xlu0 %509
    %511 = vset.pattern.permute.xlu0 0
    %512 = vperm.xlu0 %511, %v357
    %v513 = vpop.permute.xlu0 %512
    %514 = vset.pattern.permute.xlu0 0
    %515 = vperm.xlu0 %514, %v358
    %v516 = vpop.permute.xlu0 %515
    %517 = vset.pattern.permute.xlu0 0
    %518 = vperm.xlu0 %517, %v359
    %v519 = vpop.permute.xlu0 %518
    %520 = vset.pattern.permute.xlu0 0
    %521 = vperm.xlu0 %520, %v360
    %v522 = vpop.permute.xlu0 %521
    %523 = vset.pattern.permute.xlu0 0
    %524 = vperm.xlu0 %523, %v361
    %v525 = vpop.permute.xlu0 %524
    %526 = vset.pattern.permute.xlu0 0
    %527 = vperm.xlu0 %526, %v362
    %v528 = vpop.permute.xlu0 %527
    %529 = vset.pattern.permute.xlu0 0
    %530 = vperm.xlu0 %529, %v363
    %v531 = vpop.permute.xlu0 %530
    %532 = vset.pattern.permute.xlu0 0
    %533 = vperm.xlu0 %532, %v364
    %v534 = vpop.permute.xlu0 %533
    %535 = vset.pattern.permute.xlu0 0
    %536 = vperm.xlu0 %535, %v365
    %v537 = vpop.permute.xlu0 %536
    %538 = vset.pattern.permute.xlu0 0
    %539 = vperm.xlu0 %538, %v366
    %v540 = vpop.permute.xlu0 %539
    %541 = vset.pattern.permute.xlu0 0
    %542 = vperm.xlu0 %541, %v367
    %v543 = vpop.permute.xlu0 %542
    %544 = vset.pattern.permute.xlu0 0
    %545 = vperm.xlu0 %544, %v368
    %v546 = vpop.permute.xlu0 %545
    %547 = vset.pattern.permute.xlu0 0
    %548 = vperm.xlu0 %547, %v369
    %v549 = vpop.permute.xlu0 %548
    %550 = vset.pattern.permute.xlu0 0
    %551 = vperm.xlu0 %550, %v370
    %v552 = vpop.permute.xlu0 %551
    %553 = vset.pattern.permute.xlu0 0
    %554 = vperm.xlu0 %553, %v371
    %v555 = vpop.permute.xlu0 %554
    %556 = vset.pattern.permute.xlu0 0
    %557 = vperm.xlu0 %556, %v372
    %v558 = vpop.permute.xlu0 %557
    %559 = vset.pattern.permute.xlu0 0
    %560 = vperm.xlu0 %559, %v373
    %v561 = vpop.permute.xlu0 %560
    %562 = vset.pattern.permute.xlu0 0
    %563 = vperm.xlu0 %562, %v374
    %v564 = vpop.permute.xlu0 %563
    %565 = vset.pattern.permute.xlu0 0
    %566 = vperm.xlu0 %565, %v375
    %v567 = vpop.permute.xlu0 %566
    %568 = vset.pattern.permute.xlu0 0
    %569 = vperm.xlu0 %568, %v376
    %v570 = vpop.permute.xlu0 %569
    %571 = vset.pattern.permute.xlu0 0
    %572 = vperm.xlu0 %571, %v377
    %v573 = vpop.permute.xlu0 %572
    %574 = vset.pattern.permute.xlu0 0
    %575 = vperm.xlu0 %574, %v378
    %v576 = vpop.permute.xlu0 %575
    %577 = vset.pattern.permute.xlu0 0
    %578 = vperm.xlu0 %577, %v379
    %v579 = vpop.permute.xlu0 %578
    %580 = vset.pattern.permute.xlu0 0
    %581 = vperm.xlu0 %580, %v380
    %v582 = vpop.permute.xlu0 %581
    %583 = vset.pattern.permute.xlu0 0
    %584 = vperm.xlu0 %583, %v381
    %v585 = vpop.permute.xlu0 %584
    %586 = vset.pattern.permute.xlu0 0
    %587 = vperm.xlu0 %586, %v382
    %v588 = vpop.permute.xlu0 %587
    %589 = vset.pattern.permute.xlu0 0
    %590 = vperm.xlu0 %589, %v383
    %v591 = vpop.permute.xlu0 %590
    %592 = vset.pattern.permute.xlu0 0
    %593 = vperm.xlu0 %592, %v384
    %v594 = vpop.permute.xlu0 %593
    %595 = vset.pattern.permute.xlu0 0
    %596 = vperm.xlu0 %595, %v385
    %v597 = vpop.permute.xlu0 %596
    %598 = vset.pattern.permute.xlu0 0
    %599 = vperm.xlu0 %598, %v386
    %v600 = vpop.permute.xlu0 %599
    %601 = vset.pattern.permute.xlu0 0
    %602 = vperm.xlu0 %601, %v387
    %v603 = vpop.permute.xlu0 %602
    %604 = vset.pattern.permute.xlu0 0
    %605 = vperm.xlu0 %604, %v388
    %v606 = vpop.permute.xlu0 %605
    %607 = vset.pattern.permute.xlu0 0
    %608 = vperm.xlu0 %607, %v389
    %v609 = vpop.permute.xlu0 %608
    %610 = vset.pattern.permute.xlu0 0
    %611 = vperm.xlu0 %610, %v390
    %v612 = vpop.permute.xlu0 %611
    %613 = vset.pattern.permute.xlu0 0
    %614 = vperm.xlu0 %613, %v391
    %v615 = vpop.permute.xlu0 %614
    %616 = vset.pattern.permute.xlu0 0
    %617 = vperm.xlu0 %616, %v392
    %v618 = vpop.permute.xlu0 %617
    %619 = vset.pattern.permute.xlu0 0
    %620 = vperm.xlu0 %619, %v393
    %v621 = vpop.permute.xlu0 %620
    %622 = vset.pattern.permute.xlu0 0
    %623 = vperm.xlu0 %622, %v394
    %v624 = vpop.permute.xlu0 %623
    %625 = vset.pattern.permute.xlu0 0
    %626 = vperm.xlu0 %625, %v395
    %v627 = vpop.permute.xlu0 %626
    %628 = vset.pattern.permute.xlu0 0
    %629 = vperm.xlu0 %628, %v396
    %v630 = vpop.permute.xlu0 %629
    %631 = vset.pattern.permute.xlu0 0
    %632 = vperm.xlu0 %631, %v397
    %v633 = vpop.permute.xlu0 %632
    %634 = vset.pattern.permute.xlu0 0
    %635 = vperm.xlu0 %634, %v398
    %v636 = vpop.permute.xlu0 %635
    %637 = vset.pattern.permute.xlu0 0
    %638 = vperm.xlu0 %637, %v399
    %v639 = vpop.permute.xlu0 %638
    %640 = vset.pattern.permute.xlu0 0
    %641 = vperm.xlu0 %640, %v400
    %v642 = vpop.permute.xlu0 %641
    %643 = vset.pattern.permute.xlu0 0
    %644 = vperm.xlu0 %643, %v401
    %v645 = vpop.permute.xlu0 %644
    %646 = vset.pattern.permute.xlu0 0
    %647 = vperm.xlu0 %646, %v402
    %v648 = vpop.permute.xlu0 %647
    %649 = vset.pattern.permute.xlu0 0
    %650 = vperm.xlu0 %649, %v403
    %v651 = vpop.permute.xlu0 %650
    %652 = vset.pattern.permute.xlu0 0
    %653 = vperm.xlu0 %652, %v404
    %v654 = vpop.permute.xlu0 %653
    %655 = vset.pattern.permute.xlu0 0
    %656 = vperm.xlu0 %655, %v405
    %v657 = vpop.permute.xlu0 %656
    %658 = vset.pattern.permute.xlu0 0
    %659 = vperm.xlu0 %658, %v406
    %v660 = vpop.permute.xlu0 %659
    %661 = vset.pattern.permute.xlu0 0
    %662 = vperm.xlu0 %661, %v407
    %v663 = vpop.permute.xlu0 %662
    %v664 = vlaneseq
    %v665 = vshrl.u32 %v664, 7
    %v666 = vsub.s32 %v31, %v665
    %v667 = vrot.slane %v474, %v666
    %v668 = vadd.s32 %v31, 4294967288
    %v669 = vlaneseq
    %v670 = vshrl.u32 %v669, 7
    %v671 = vsub.s32 %v668, %v670
    %v672 = vrot.slane %v477, %v671
    %vm673 = vcmask 130112
    %v674 = vsel %vm673, %v672, %v667
    %v675 = vlaneseq
    %v676 = vshrl.u32 %v675, 7
    %v677 = vsub.s32 %v31, %v676
    %v678 = vrot.slane %v480, %v677
    %v679 = vlaneseq
    %v680 = vshrl.u32 %v679, 7
    %v681 = vsub.s32 %v668, %v680
    %v682 = vrot.slane %v483, %v681
    %v683 = vsel %vm673, %v682, %v678
    %v684 = vlaneseq
    %v685 = vshrl.u32 %v684, 7
    %v686 = vsub.s32 %v31, %v685
    %v687 = vrot.slane %v486, %v686
    %v688 = vlaneseq
    %v689 = vshrl.u32 %v688, 7
    %v690 = vsub.s32 %v668, %v689
    %v691 = vrot.slane %v489, %v690
    %v692 = vsel %vm673, %v691, %v687
    %v693 = vlaneseq
    %v694 = vshrl.u32 %v693, 7
    %v695 = vsub.s32 %v31, %v694
    %v696 = vrot.slane %v492, %v695
    %v697 = vlaneseq
    %v698 = vshrl.u32 %v697, 7
    %v699 = vsub.s32 %v668, %v698
    %v700 = vrot.slane %v495, %v699
    %v701 = vsel %vm673, %v700, %v696
    %v702 = vlaneseq
    %v703 = vshrl.u32 %v702, 7
    %v704 = vsub.s32 %v31, %v703
    %v705 = vrot.slane %v498, %v704
    %v706 = vlaneseq
    %v707 = vshrl.u32 %v706, 7
    %v708 = vsub.s32 %v668, %v707
    %v709 = vrot.slane %v501, %v708
    %v710 = vsel %vm673, %v709, %v705
    %v711 = vlaneseq
    %v712 = vshrl.u32 %v711, 7
    %v713 = vsub.s32 %v31, %v712
    %v714 = vrot.slane %v504, %v713
    %v715 = vlaneseq
    %v716 = vshrl.u32 %v715, 7
    %v717 = vsub.s32 %v668, %v716
    %v718 = vrot.slane %v507, %v717
    %v719 = vsel %vm673, %v718, %v714
    %v720 = vlaneseq
    %v721 = vshrl.u32 %v720, 7
    %v722 = vsub.s32 %v31, %v721
    %v723 = vrot.slane %v510, %v722
    %v724 = vlaneseq
    %v725 = vshrl.u32 %v724, 7
    %v726 = vsub.s32 %v668, %v725
    %v727 = vrot.slane %v513, %v726
    %v728 = vsel %vm673, %v727, %v723
    %v729 = vlaneseq
    %v730 = vshrl.u32 %v729, 7
    %v731 = vsub.s32 %v31, %v730
    %v732 = vrot.slane %v516, %v731
    %v733 = vlaneseq
    %v734 = vshrl.u32 %v733, 7
    %v735 = vsub.s32 %v668, %v734
    %v736 = vrot.slane %v519, %v735
    %v737 = vsel %vm673, %v736, %v732
    %v738 = vlaneseq
    %v739 = vshrl.u32 %v738, 7
    %v740 = vsub.s32 %v31, %v739
    %v741 = vrot.slane %v522, %v740
    %v742 = vlaneseq
    %v743 = vshrl.u32 %v742, 7
    %v744 = vsub.s32 %v668, %v743
    %v745 = vrot.slane %v525, %v744
    %v746 = vsel %vm673, %v745, %v741
    %v747 = vlaneseq
    %v748 = vshrl.u32 %v747, 7
    %v749 = vsub.s32 %v31, %v748
    %v750 = vrot.slane %v528, %v749
    %v751 = vlaneseq
    %v752 = vshrl.u32 %v751, 7
    %v753 = vsub.s32 %v668, %v752
    %v754 = vrot.slane %v531, %v753
    %v755 = vsel %vm673, %v754, %v750
    %v756 = vlaneseq
    %v757 = vshrl.u32 %v756, 7
    %v758 = vsub.s32 %v31, %v757
    %v759 = vrot.slane %v534, %v758
    %v760 = vlaneseq
    %v761 = vshrl.u32 %v760, 7
    %v762 = vsub.s32 %v668, %v761
    %v763 = vrot.slane %v537, %v762
    %v764 = vsel %vm673, %v763, %v759
    %v765 = vlaneseq
    %v766 = vshrl.u32 %v765, 7
    %v767 = vsub.s32 %v31, %v766
    %v768 = vrot.slane %v540, %v767
    %v769 = vlaneseq
    %v770 = vshrl.u32 %v769, 7
    %v771 = vsub.s32 %v668, %v770
    %v772 = vrot.slane %v543, %v771
    %v773 = vsel %vm673, %v772, %v768
    %v774 = vlaneseq
    %v775 = vshrl.u32 %v774, 7
    %v776 = vsub.s32 %v31, %v775
    %v777 = vrot.slane %v546, %v776
    %v778 = vlaneseq
    %v779 = vshrl.u32 %v778, 7
    %v780 = vsub.s32 %v668, %v779
    %v781 = vrot.slane %v549, %v780
    %v782 = vsel %vm673, %v781, %v777
    %v783 = vlaneseq
    %v784 = vshrl.u32 %v783, 7
    %v785 = vsub.s32 %v31, %v784
    %v786 = vrot.slane %v552, %v785
    %v787 = vlaneseq
    %v788 = vshrl.u32 %v787, 7
    %v789 = vsub.s32 %v668, %v788
    %v790 = vrot.slane %v555, %v789
    %v791 = vsel %vm673, %v790, %v786
    %v792 = vlaneseq
    %v793 = vshrl.u32 %v792, 7
    %v794 = vsub.s32 %v31, %v793
    %v795 = vrot.slane %v558, %v794
    %v796 = vlaneseq
    %v797 = vshrl.u32 %v796, 7
    %v798 = vsub.s32 %v668, %v797
    %v799 = vrot.slane %v561, %v798
    %v800 = vsel %vm673, %v799, %v795
    %v801 = vlaneseq
    %v802 = vshrl.u32 %v801, 7
    %v803 = vsub.s32 %v31, %v802
    %v804 = vrot.slane %v564, %v803
    %v805 = vlaneseq
    %v806 = vshrl.u32 %v805, 7
    %v807 = vsub.s32 %v668, %v806
    %v808 = vrot.slane %v567, %v807
    %v809 = vsel %vm673, %v808, %v804
    %v810 = vlaneseq
    %v811 = vshrl.u32 %v810, 7
    %v812 = vsub.s32 %v31, %v811
    %v813 = vrot.slane %v570, %v812
    %v814 = vlaneseq
    %v815 = vshrl.u32 %v814, 7
    %v816 = vsub.s32 %v668, %v815
    %v817 = vrot.slane %v573, %v816
    %v818 = vsel %vm673, %v817, %v813
    %v819 = vlaneseq
    %v820 = vshrl.u32 %v819, 7
    %v821 = vsub.s32 %v31, %v820
    %v822 = vrot.slane %v576, %v821
    %v823 = vlaneseq
    %v824 = vshrl.u32 %v823, 7
    %v825 = vsub.s32 %v668, %v824
    %v826 = vrot.slane %v579, %v825
    %v827 = vsel %vm673, %v826, %v822
    %v828 = vlaneseq
    %v829 = vshrl.u32 %v828, 7
    %v830 = vsub.s32 %v31, %v829
    %v831 = vrot.slane %v582, %v830
    %v832 = vlaneseq
    %v833 = vshrl.u32 %v832, 7
    %v834 = vsub.s32 %v668, %v833
    %v835 = vrot.slane %v585, %v834
    %v836 = vsel %vm673, %v835, %v831
    %v837 = vlaneseq
    %v838 = vshrl.u32 %v837, 7
    %v839 = vsub.s32 %v31, %v838
    %v840 = vrot.slane %v588, %v839
    %v841 = vlaneseq
    %v842 = vshrl.u32 %v841, 7
    %v843 = vsub.s32 %v668, %v842
    %v844 = vrot.slane %v591, %v843
    %v845 = vsel %vm673, %v844, %v840
    %v846 = vlaneseq
    %v847 = vshrl.u32 %v846, 7
    %v848 = vsub.s32 %v31, %v847
    %v849 = vrot.slane %v594, %v848
    %v850 = vlaneseq
    %v851 = vshrl.u32 %v850, 7
    %v852 = vsub.s32 %v668, %v851
    %v853 = vrot.slane %v597, %v852
    %v854 = vsel %vm673, %v853, %v849
    %v855 = vlaneseq
    %v856 = vshrl.u32 %v855, 7
    %v857 = vsub.s32 %v31, %v856
    %v858 = vrot.slane %v600, %v857
    %v859 = vlaneseq
    %v860 = vshrl.u32 %v859, 7
    %v861 = vsub.s32 %v668, %v860
    %v862 = vrot.slane %v603, %v861
    %v863 = vsel %vm673, %v862, %v858
    %v864 = vlaneseq
    %v865 = vshrl.u32 %v864, 7
    %v866 = vsub.s32 %v31, %v865
    %v867 = vrot.slane %v606, %v866
    %v868 = vlaneseq
    %v869 = vshrl.u32 %v868, 7
    %v870 = vsub.s32 %v668, %v869
    %v871 = vrot.slane %v609, %v870
    %v872 = vsel %vm673, %v871, %v867
    %v873 = vlaneseq
    %v874 = vshrl.u32 %v873, 7
    %v875 = vsub.s32 %v31, %v874
    %v876 = vrot.slane %v612, %v875
    %v877 = vlaneseq
    %v878 = vshrl.u32 %v877, 7
    %v879 = vsub.s32 %v668, %v878
    %v880 = vrot.slane %v615, %v879
    %v881 = vsel %vm673, %v880, %v876
    %v882 = vlaneseq
    %v883 = vshrl.u32 %v882, 7
    %v884 = vsub.s32 %v31, %v883
    %v885 = vrot.slane %v618, %v884
    %v886 = vlaneseq
    %v887 = vshrl.u32 %v886, 7
    %v888 = vsub.s32 %v668, %v887
    %v889 = vrot.slane %v621, %v888
    %v890 = vsel %vm673, %v889, %v885
    %v891 = vlaneseq
    %v892 = vshrl.u32 %v891, 7
    %v893 = vsub.s32 %v31, %v892
    %v894 = vrot.slane %v624, %v893
    %v895 = vlaneseq
    %v896 = vshrl.u32 %v895, 7
    %v897 = vsub.s32 %v668, %v896
    %v898 = vrot.slane %v627, %v897
    %v899 = vsel %vm673, %v898, %v894
    %v900 = vlaneseq
    %v901 = vshrl.u32 %v900, 7
    %v902 = vsub.s32 %v31, %v901
    %v903 = vrot.slane %v630, %v902
    %v904 = vlaneseq
    %v905 = vshrl.u32 %v904, 7
    %v906 = vsub.s32 %v668, %v905
    %v907 = vrot.slane %v633, %v906
    %v908 = vsel %vm673, %v907, %v903
    %v909 = vlaneseq
    %v910 = vshrl.u32 %v909, 7
    %v911 = vsub.s32 %v31, %v910
    %v912 = vrot.slane %v636, %v911
    %v913 = vlaneseq
    %v914 = vshrl.u32 %v913, 7
    %v915 = vsub.s32 %v668, %v914
    %v916 = vrot.slane %v639, %v915
    %v917 = vsel %vm673, %v916, %v912
    %v918 = vlaneseq
    %v919 = vshrl.u32 %v918, 7
    %v920 = vsub.s32 %v31, %v919
    %v921 = vrot.slane %v642, %v920
    %v922 = vlaneseq
    %v923 = vshrl.u32 %v922, 7
    %v924 = vsub.s32 %v668, %v923
    %v925 = vrot.slane %v645, %v924
    %v926 = vsel %vm673, %v925, %v921
    %v927 = vlaneseq
    %v928 = vshrl.u32 %v927, 7
    %v929 = vsub.s32 %v31, %v928
    %v930 = vrot.slane %v648, %v929
    %v931 = vlaneseq
    %v932 = vshrl.u32 %v931, 7
    %v933 = vsub.s32 %v668, %v932
    %v934 = vrot.slane %v651, %v933
    %v935 = vsel %vm673, %v934, %v930
    %v936 = vlaneseq
    %v937 = vshrl.u32 %v936, 7
    %v938 = vsub.s32 %v31, %v937
    %v939 = vrot.slane %v654, %v938
    %v940 = vlaneseq
    %v941 = vshrl.u32 %v940, 7
    %v942 = vsub.s32 %v668, %v941
    %v943 = vrot.slane %v657, %v942
    %v944 = vsel %vm673, %v943, %v939
    %v945 = vlaneseq
    %v946 = vshrl.u32 %v945, 7
    %v947 = vsub.s32 %v31, %v946
    %v948 = vrot.slane %v660, %v947
    %v949 = vlaneseq
    %v950 = vshrl.u32 %v949, 7
    %v951 = vsub.s32 %v668, %v950
    %v952 = vrot.slane %v663, %v951
    %v953 = vsel %vm673, %v952, %v948
    %vm954 = vcmask 1041409
    %v955 = vsel %vm954, %v683, %v674
    %vm956 = vcmask 1042434
    %v957 = vsel %vm956, %v692, %v955
    %vm958 = vcmask 1043459
    %v959 = vsel %vm958, %v701, %v957
    %vm960 = vcmask 1044484
    %v961 = vsel %vm960, %v710, %v959
    %vm962 = vcmask 1045509
    %v963 = vsel %vm962, %v719, %v961
    %vm964 = vcmask 1046534
    %v965 = vsel %vm964, %v728, %v963
    %vm966 = vcmask 1047559
    %v967 = vsel %vm966, %v737, %v965
    %v968 = vsel %vm954, %v755, %v746
    %v969 = vsel %vm956, %v764, %v968
    %v970 = vsel %vm958, %v773, %v969
    %v971 = vsel %vm960, %v782, %v970
    %v972 = vsel %vm962, %v791, %v971
    %v973 = vsel %vm964, %v800, %v972
    %v974 = vsel %vm966, %v809, %v973
    %v975 = vsel %vm954, %v827, %v818
    %v976 = vsel %vm956, %v836, %v975
    %v977 = vsel %vm958, %v845, %v976
    %v978 = vsel %vm960, %v854, %v977
    %v979 = vsel %vm962, %v863, %v978
    %v980 = vsel %vm964, %v872, %v979
    %v981 = vsel %vm966, %v881, %v980
    %v982 = vsel %vm954, %v899, %v890
    %v983 = vsel %vm956, %v908, %v982
    %v984 = vsel %vm958, %v917, %v983
    %v985 = vsel %vm960, %v926, %v984
    %v986 = vsel %vm962, %v935, %v985
    %v987 = vsel %vm964, %v944, %v986
    %v988 = vsel %vm966, %v953, %v987
    %v993 = vsel %vm113, %v967, 0.0
    %994 = vadd.xlane.f32.xlu0 %v993
    %v995 = vpop.xlane.xlu0 %994
    %v996 = vsel %vm113, %v974, 0.0
    %997 = vadd.xlane.f32.xlu0 %v996
    %v998 = vpop.xlane.xlu0 %997
    %v999 = vsel %vm113, %v981, 0.0
    %1000 = vadd.xlane.f32.xlu0 %v999
    %v1001 = vpop.xlane.xlu0 %1000
    %v1002 = vsel %vm113, %v988, 0.0
    %1003 = vadd.xlane.f32.xlu0 %v1002
    %v1004 = vpop.xlane.xlu0 %1003
    %1007 = vbcast.lane.b32.xlu0 %v294, 256
    %v1008 = vpop.permute.xlu0 %1007
    %s1010 = sor.u32 256, 8
    %1011 = vbcast.lane.b32.xlu0 %v294, %s1010
    %v1012 = vpop.permute.xlu0 %1011
    %v1015 = vsel %vm230, %v1008, 0.0
    %v1016 = vsel %vm231, %v1012, 0.0
    %v1017 = vsel %vm232, %v1008, 0.0
    %v1018 = vsel %vm233, %v1012, 0.0
    %v1019 = vsel %vm234, %v1008, 0.0
    %v1020 = vsel %vm235, %v1012, 0.0
    %v1021 = vsel %vm236, %v1008, 0.0
    %v1022 = vsel %vm237, %v1012, 0.0
    %v1023 = vsel %vm238, %v1008, 0.0
    %v1024 = vsel %vm239, %v1012, 0.0
    %v1025 = vsel %vm240, %v1008, 0.0
    %v1026 = vsel %vm241, %v1012, 0.0
    %v1027 = vsel %vm242, %v1008, 0.0
    %v1028 = vsel %vm243, %v1012, 0.0
    %v1029 = vsel %vm244, %v1008, 0.0
    %v1030 = vsel %vm245, %v1012, 0.0
    %v1031 = vsel %vm246, %v1008, 0.0
    %v1032 = vsel %vm247, %v1012, 0.0
    %v1033 = vsel %vm248, %v1008, 0.0
    %v1034 = vsel %vm249, %v1012, 0.0
    %v1035 = vsel %vm250, %v1008, 0.0
    %v1036 = vsel %vm251, %v1012, 0.0
    %v1037 = vsel %vm252, %v1008, 0.0
    %v1038 = vsel %vm253, %v1012, 0.0
    %v1039 = vsel %vm254, %v1008, 0.0
    %v1040 = vsel %vm255, %v1012, 0.0
    %v1041 = vsel %vm256, %v1008, 0.0
    %v1042 = vsel %vm257, %v1012, 0.0
    %v1043 = vsel %vm258, %v1008, 0.0
    %v1044 = vsel %vm259, %v1012, 0.0
    %v1045 = vsel %vm260, %v1008, 0.0
    %v1046 = vsel %vm261, %v1012, 0.0
    %v1047 = vsel %vm262, %v1008, 0.0
    %v1048 = vsel %vm263, %v1012, 0.0
    %v1049 = vsel %vm264, %v1008, 0.0
    %v1050 = vsel %vm265, %v1012, 0.0
    %v1051 = vsel %vm266, %v1008, 0.0
    %v1052 = vsel %vm267, %v1012, 0.0
    %v1053 = vsel %vm268, %v1008, 0.0
    %v1054 = vsel %vm269, %v1012, 0.0
    %v1055 = vsel %vm270, %v1008, 0.0
    %v1056 = vsel %vm271, %v1012, 0.0
    %v1057 = vsel %vm272, %v1008, 0.0
    %v1058 = vsel %vm273, %v1012, 0.0
    %v1059 = vsel %vm274, %v1008, 0.0
    %v1060 = vsel %vm275, %v1012, 0.0
    %v1061 = vsel %vm276, %v1008, 0.0
    %v1062 = vsel %vm277, %v1012, 0.0
    %v1063 = vsel %vm278, %v1008, 0.0
    %v1064 = vsel %vm279, %v1012, 0.0
    %v1065 = vsel %vm280, %v1008, 0.0
    %v1066 = vsel %vm281, %v1012, 0.0
    %v1067 = vsel %vm282, %v1008, 0.0
    %v1068 = vsel %vm283, %v1012, 0.0
    %v1069 = vsel %vm284, %v1008, 0.0
    %v1070 = vsel %vm285, %v1012, 0.0
    %v1071 = vsel %vm286, %v1008, 0.0
    %v1072 = vsel %vm287, %v1012, 0.0
    %v1073 = vsel %vm288, %v1008, 0.0
    %v1074 = vsel %vm289, %v1012, 0.0
    %v1075 = vsel %vm290, %v1008, 0.0
    %v1076 = vsel %vm291, %v1012, 0.0
    %v1077 = vsel %vm292, %v1008, 0.0
    %v1078 = vsel %vm293, %v1012, 0.0
    %1143 = vset.pattern.permute.xlu0 0
    %1144 = vperm.xlu0 %1143, %v1015
    %v1145 = vpop.permute.xlu0 %1144
    %1146 = vset.pattern.permute.xlu0 0
    %1147 = vperm.xlu0 %1146, %v1016
    %v1148 = vpop.permute.xlu0 %1147
    %1149 = vset.pattern.permute.xlu0 0
    %1150 = vperm.xlu0 %1149, %v1017
    %v1151 = vpop.permute.xlu0 %1150
    %1152 = vset.pattern.permute.xlu0 0
    %1153 = vperm.xlu0 %1152, %v1018
    %v1154 = vpop.permute.xlu0 %1153
    %1155 = vset.pattern.permute.xlu0 0
    %1156 = vperm.xlu0 %1155, %v1019
    %v1157 = vpop.permute.xlu0 %1156
    %1158 = vset.pattern.permute.xlu0 0
    %1159 = vperm.xlu0 %1158, %v1020
    %v1160 = vpop.permute.xlu0 %1159
    %1161 = vset.pattern.permute.xlu0 0
    %1162 = vperm.xlu0 %1161, %v1021
    %v1163 = vpop.permute.xlu0 %1162
    %1164 = vset.pattern.permute.xlu0 0
    %1165 = vperm.xlu0 %1164, %v1022
    %v1166 = vpop.permute.xlu0 %1165
    %1167 = vset.pattern.permute.xlu0 0
    %1168 = vperm.xlu0 %1167, %v1023
    %v1169 = vpop.permute.xlu0 %1168
    %1170 = vset.pattern.permute.xlu0 0
    %1171 = vperm.xlu0 %1170, %v1024
    %v1172 = vpop.permute.xlu0 %1171
    %1173 = vset.pattern.permute.xlu0 0
    %1174 = vperm.xlu0 %1173, %v1025
    %v1175 = vpop.permute.xlu0 %1174
    %1176 = vset.pattern.permute.xlu0 0
    %1177 = vperm.xlu0 %1176, %v1026
    %v1178 = vpop.permute.xlu0 %1177
    %1179 = vset.pattern.permute.xlu0 0
    %1180 = vperm.xlu0 %1179, %v1027
    %v1181 = vpop.permute.xlu0 %1180
    %1182 = vset.pattern.permute.xlu0 0
    %1183 = vperm.xlu0 %1182, %v1028
    %v1184 = vpop.permute.xlu0 %1183
    %1185 = vset.pattern.permute.xlu0 0
    %1186 = vperm.xlu0 %1185, %v1029
    %v1187 = vpop.permute.xlu0 %1186
    %1188 = vset.pattern.permute.xlu0 0
    %1189 = vperm.xlu0 %1188, %v1030
    %v1190 = vpop.permute.xlu0 %1189
    %1191 = vset.pattern.permute.xlu0 0
    %1192 = vperm.xlu0 %1191, %v1031
    %v1193 = vpop.permute.xlu0 %1192
    %1194 = vset.pattern.permute.xlu0 0
    %1195 = vperm.xlu0 %1194, %v1032
    %v1196 = vpop.permute.xlu0 %1195
    %1197 = vset.pattern.permute.xlu0 0
    %1198 = vperm.xlu0 %1197, %v1033
    %v1199 = vpop.permute.xlu0 %1198
    %1200 = vset.pattern.permute.xlu0 0
    %1201 = vperm.xlu0 %1200, %v1034
    %v1202 = vpop.permute.xlu0 %1201
    %1203 = vset.pattern.permute.xlu0 0
    %1204 = vperm.xlu0 %1203, %v1035
    %v1205 = vpop.permute.xlu0 %1204
    %1206 = vset.pattern.permute.xlu0 0
    %1207 = vperm.xlu0 %1206, %v1036
    %v1208 = vpop.permute.xlu0 %1207
    %1209 = vset.pattern.permute.xlu0 0
    %1210 = vperm.xlu0 %1209, %v1037
    %v1211 = vpop.permute.xlu0 %1210
    %1212 = vset.pattern.permute.xlu0 0
    %1213 = vperm.xlu0 %1212, %v1038
    %v1214 = vpop.permute.xlu0 %1213
    %1215 = vset.pattern.permute.xlu0 0
    %1216 = vperm.xlu0 %1215, %v1039
    %v1217 = vpop.permute.xlu0 %1216
    %1218 = vset.pattern.permute.xlu0 0
    %1219 = vperm.xlu0 %1218, %v1040
    %v1220 = vpop.permute.xlu0 %1219
    %1221 = vset.pattern.permute.xlu0 0
    %1222 = vperm.xlu0 %1221, %v1041
    %v1223 = vpop.permute.xlu0 %1222
    %1224 = vset.pattern.permute.xlu0 0
    %1225 = vperm.xlu0 %1224, %v1042
    %v1226 = vpop.permute.xlu0 %1225
    %1227 = vset.pattern.permute.xlu0 0
    %1228 = vperm.xlu0 %1227, %v1043
    %v1229 = vpop.permute.xlu0 %1228
    %1230 = vset.pattern.permute.xlu0 0
    %1231 = vperm.xlu0 %1230, %v1044
    %v1232 = vpop.permute.xlu0 %1231
    %1233 = vset.pattern.permute.xlu0 0
    %1234 = vperm.xlu0 %1233, %v1045
    %v1235 = vpop.permute.xlu0 %1234
    %1236 = vset.pattern.permute.xlu0 0
    %1237 = vperm.xlu0 %1236, %v1046
    %v1238 = vpop.permute.xlu0 %1237
    %1239 = vset.pattern.permute.xlu0 0
    %1240 = vperm.xlu0 %1239, %v1047
    %v1241 = vpop.permute.xlu0 %1240
    %1242 = vset.pattern.permute.xlu0 0
    %1243 = vperm.xlu0 %1242, %v1048
    %v1244 = vpop.permute.xlu0 %1243
    %1245 = vset.pattern.permute.xlu0 0
    %1246 = vperm.xlu0 %1245, %v1049
    %v1247 = vpop.permute.xlu0 %1246
    %1248 = vset.pattern.permute.xlu0 0
    %1249 = vperm.xlu0 %1248, %v1050
    %v1250 = vpop.permute.xlu0 %1249
    %1251 = vset.pattern.permute.xlu0 0
    %1252 = vperm.xlu0 %1251, %v1051
    %v1253 = vpop.permute.xlu0 %1252
    %1254 = vset.pattern.permute.xlu0 0
    %1255 = vperm.xlu0 %1254, %v1052
    %v1256 = vpop.permute.xlu0 %1255
    %1257 = vset.pattern.permute.xlu0 0
    %1258 = vperm.xlu0 %1257, %v1053
    %v1259 = vpop.permute.xlu0 %1258
    %1260 = vset.pattern.permute.xlu0 0
    %1261 = vperm.xlu0 %1260, %v1054
    %v1262 = vpop.permute.xlu0 %1261
    %1263 = vset.pattern.permute.xlu0 0
    %1264 = vperm.xlu0 %1263, %v1055
    %v1265 = vpop.permute.xlu0 %1264
    %1266 = vset.pattern.permute.xlu0 0
    %1267 = vperm.xlu0 %1266, %v1056
    %v1268 = vpop.permute.xlu0 %1267
    %1269 = vset.pattern.permute.xlu0 0
    %1270 = vperm.xlu0 %1269, %v1057
    %v1271 = vpop.permute.xlu0 %1270
    %1272 = vset.pattern.permute.xlu0 0
    %1273 = vperm.xlu0 %1272, %v1058
    %v1274 = vpop.permute.xlu0 %1273
    %1275 = vset.pattern.permute.xlu0 0
    %1276 = vperm.xlu0 %1275, %v1059
    %v1277 = vpop.permute.xlu0 %1276
    %1278 = vset.pattern.permute.xlu0 0
    %1279 = vperm.xlu0 %1278, %v1060
    %v1280 = vpop.permute.xlu0 %1279
    %1281 = vset.pattern.permute.xlu0 0
    %1282 = vperm.xlu0 %1281, %v1061
    %v1283 = vpop.permute.xlu0 %1282
    %1284 = vset.pattern.permute.xlu0 0
    %1285 = vperm.xlu0 %1284, %v1062
    %v1286 = vpop.permute.xlu0 %1285
    %1287 = vset.pattern.permute.xlu0 0
    %1288 = vperm.xlu0 %1287, %v1063
    %v1289 = vpop.permute.xlu0 %1288
    %1290 = vset.pattern.permute.xlu0 0
    %1291 = vperm.xlu0 %1290, %v1064
    %v1292 = vpop.permute.xlu0 %1291
    %1293 = vset.pattern.permute.xlu0 0
    %1294 = vperm.xlu0 %1293, %v1065
    %v1295 = vpop.permute.xlu0 %1294
    %1296 = vset.pattern.permute.xlu0 0
    %1297 = vperm.xlu0 %1296, %v1066
    %v1298 = vpop.permute.xlu0 %1297
    %1299 = vset.pattern.permute.xlu0 0
    %1300 = vperm.xlu0 %1299, %v1067
    %v1301 = vpop.permute.xlu0 %1300
    %1302 = vset.pattern.permute.xlu0 0
    %1303 = vperm.xlu0 %1302, %v1068
    %v1304 = vpop.permute.xlu0 %1303
    %1305 = vset.pattern.permute.xlu0 0
    %1306 = vperm.xlu0 %1305, %v1069
    %v1307 = vpop.permute.xlu0 %1306
    %1308 = vset.pattern.permute.xlu0 0
    %1309 = vperm.xlu0 %1308, %v1070
    %v1310 = vpop.permute.xlu0 %1309
    %1311 = vset.pattern.permute.xlu0 0
    %1312 = vperm.xlu0 %1311, %v1071
    %v1313 = vpop.permute.xlu0 %1312
    %1314 = vset.pattern.permute.xlu0 0
    %1315 = vperm.xlu0 %1314, %v1072
    %v1316 = vpop.permute.xlu0 %1315
    %1317 = vset.pattern.permute.xlu0 0
    %1318 = vperm.xlu0 %1317, %v1073
    %v1319 = vpop.permute.xlu0 %1318
    %1320 = vset.pattern.permute.xlu0 0
    %1321 = vperm.xlu0 %1320, %v1074
    %v1322 = vpop.permute.xlu0 %1321
    %1323 = vset.pattern.permute.xlu0 0
    %1324 = vperm.xlu0 %1323, %v1075
    %v1325 = vpop.permute.xlu0 %1324
    %1326 = vset.pattern.permute.xlu0 0
    %1327 = vperm.xlu0 %1326, %v1076
    %v1328 = vpop.permute.xlu0 %1327
    %1329 = vset.pattern.permute.xlu0 0
    %1330 = vperm.xlu0 %1329, %v1077
    %v1331 = vpop.permute.xlu0 %1330
    %1332 = vset.pattern.permute.xlu0 0
    %1333 = vperm.xlu0 %1332, %v1078
    %v1334 = vpop.permute.xlu0 %1333
    %v1335 = vlaneseq
    %v1336 = vshrl.u32 %v1335, 7
    %v1337 = vsub.s32 %v31, %v1336
    %v1338 = vrot.slane %v1145, %v1337
    %v1339 = vlaneseq
    %v1340 = vshrl.u32 %v1339, 7
    %v1341 = vsub.s32 %v668, %v1340
    %v1342 = vrot.slane %v1148, %v1341
    %v1343 = vsel %vm673, %v1342, %v1338
    %v1344 = vlaneseq
    %v1345 = vshrl.u32 %v1344, 7
    %v1346 = vsub.s32 %v31, %v1345
    %v1347 = vrot.slane %v1151, %v1346
    %v1348 = vlaneseq
    %v1349 = vshrl.u32 %v1348, 7
    %v1350 = vsub.s32 %v668, %v1349
    %v1351 = vrot.slane %v1154, %v1350
    %v1352 = vsel %vm673, %v1351, %v1347
    %v1353 = vlaneseq
    %v1354 = vshrl.u32 %v1353, 7
    %v1355 = vsub.s32 %v31, %v1354
    %v1356 = vrot.slane %v1157, %v1355
    %v1357 = vlaneseq
    %v1358 = vshrl.u32 %v1357, 7
    %v1359 = vsub.s32 %v668, %v1358
    %v1360 = vrot.slane %v1160, %v1359
    %v1361 = vsel %vm673, %v1360, %v1356
    %v1362 = vlaneseq
    %v1363 = vshrl.u32 %v1362, 7
    %v1364 = vsub.s32 %v31, %v1363
    %v1365 = vrot.slane %v1163, %v1364
    %v1366 = vlaneseq
    %v1367 = vshrl.u32 %v1366, 7
    %v1368 = vsub.s32 %v668, %v1367
    %v1369 = vrot.slane %v1166, %v1368
    %v1370 = vsel %vm673, %v1369, %v1365
    %v1371 = vlaneseq
    %v1372 = vshrl.u32 %v1371, 7
    %v1373 = vsub.s32 %v31, %v1372
    %v1374 = vrot.slane %v1169, %v1373
    %v1375 = vlaneseq
    %v1376 = vshrl.u32 %v1375, 7
    %v1377 = vsub.s32 %v668, %v1376
    %v1378 = vrot.slane %v1172, %v1377
    %v1379 = vsel %vm673, %v1378, %v1374
    %v1380 = vlaneseq
    %v1381 = vshrl.u32 %v1380, 7
    %v1382 = vsub.s32 %v31, %v1381
    %v1383 = vrot.slane %v1175, %v1382
    %v1384 = vlaneseq
    %v1385 = vshrl.u32 %v1384, 7
    %v1386 = vsub.s32 %v668, %v1385
    %v1387 = vrot.slane %v1178, %v1386
    %v1388 = vsel %vm673, %v1387, %v1383
    %v1389 = vlaneseq
    %v1390 = vshrl.u32 %v1389, 7
    %v1391 = vsub.s32 %v31, %v1390
    %v1392 = vrot.slane %v1181, %v1391
    %v1393 = vlaneseq
    %v1394 = vshrl.u32 %v1393, 7
    %v1395 = vsub.s32 %v668, %v1394
    %v1396 = vrot.slane %v1184, %v1395
    %v1397 = vsel %vm673, %v1396, %v1392
    %v1398 = vlaneseq
    %v1399 = vshrl.u32 %v1398, 7
    %v1400 = vsub.s32 %v31, %v1399
    %v1401 = vrot.slane %v1187, %v1400
    %v1402 = vlaneseq
    %v1403 = vshrl.u32 %v1402, 7
    %v1404 = vsub.s32 %v668, %v1403
    %v1405 = vrot.slane %v1190, %v1404
    %v1406 = vsel %vm673, %v1405, %v1401
    %v1407 = vlaneseq
    %v1408 = vshrl.u32 %v1407, 7
    %v1409 = vsub.s32 %v31, %v1408
    %v1410 = vrot.slane %v1193, %v1409
    %v1411 = vlaneseq
    %v1412 = vshrl.u32 %v1411, 7
    %v1413 = vsub.s32 %v668, %v1412
    %v1414 = vrot.slane %v1196, %v1413
    %v1415 = vsel %vm673, %v1414, %v1410
    %v1416 = vlaneseq
    %v1417 = vshrl.u32 %v1416, 7
    %v1418 = vsub.s32 %v31, %v1417
    %v1419 = vrot.slane %v1199, %v1418
    %v1420 = vlaneseq
    %v1421 = vshrl.u32 %v1420, 7
    %v1422 = vsub.s32 %v668, %v1421
    %v1423 = vrot.slane %v1202, %v1422
    %v1424 = vsel %vm673, %v1423, %v1419
    %v1425 = vlaneseq
    %v1426 = vshrl.u32 %v1425, 7
    %v1427 = vsub.s32 %v31, %v1426
    %v1428 = vrot.slane %v1205, %v1427
    %v1429 = vlaneseq
    %v1430 = vshrl.u32 %v1429, 7
    %v1431 = vsub.s32 %v668, %v1430
    %v1432 = vrot.slane %v1208, %v1431
    %v1433 = vsel %vm673, %v1432, %v1428
    %v1434 = vlaneseq
    %v1435 = vshrl.u32 %v1434, 7
    %v1436 = vsub.s32 %v31, %v1435
    %v1437 = vrot.slane %v1211, %v1436
    %v1438 = vlaneseq
    %v1439 = vshrl.u32 %v1438, 7
    %v1440 = vsub.s32 %v668, %v1439
    %v1441 = vrot.slane %v1214, %v1440
    %v1442 = vsel %vm673, %v1441, %v1437
    %v1443 = vlaneseq
    %v1444 = vshrl.u32 %v1443, 7
    %v1445 = vsub.s32 %v31, %v1444
    %v1446 = vrot.slane %v1217, %v1445
    %v1447 = vlaneseq
    %v1448 = vshrl.u32 %v1447, 7
    %v1449 = vsub.s32 %v668, %v1448
    %v1450 = vrot.slane %v1220, %v1449
    %v1451 = vsel %vm673, %v1450, %v1446
    %v1452 = vlaneseq
    %v1453 = vshrl.u32 %v1452, 7
    %v1454 = vsub.s32 %v31, %v1453
    %v1455 = vrot.slane %v1223, %v1454
    %v1456 = vlaneseq
    %v1457 = vshrl.u32 %v1456, 7
    %v1458 = vsub.s32 %v668, %v1457
    %v1459 = vrot.slane %v1226, %v1458
    %v1460 = vsel %vm673, %v1459, %v1455
    %v1461 = vlaneseq
    %v1462 = vshrl.u32 %v1461, 7
    %v1463 = vsub.s32 %v31, %v1462
    %v1464 = vrot.slane %v1229, %v1463
    %v1465 = vlaneseq
    %v1466 = vshrl.u32 %v1465, 7
    %v1467 = vsub.s32 %v668, %v1466
    %v1468 = vrot.slane %v1232, %v1467
    %v1469 = vsel %vm673, %v1468, %v1464
    %v1470 = vlaneseq
    %v1471 = vshrl.u32 %v1470, 7
    %v1472 = vsub.s32 %v31, %v1471
    %v1473 = vrot.slane %v1235, %v1472
    %v1474 = vlaneseq
    %v1475 = vshrl.u32 %v1474, 7
    %v1476 = vsub.s32 %v668, %v1475
    %v1477 = vrot.slane %v1238, %v1476
    %v1478 = vsel %vm673, %v1477, %v1473
    %v1479 = vlaneseq
    %v1480 = vshrl.u32 %v1479, 7
    %v1481 = vsub.s32 %v31, %v1480
    %v1482 = vrot.slane %v1241, %v1481
    %v1483 = vlaneseq
    %v1484 = vshrl.u32 %v1483, 7
    %v1485 = vsub.s32 %v668, %v1484
    %v1486 = vrot.slane %v1244, %v1485
    %v1487 = vsel %vm673, %v1486, %v1482
    %v1488 = vlaneseq
    %v1489 = vshrl.u32 %v1488, 7
    %v1490 = vsub.s32 %v31, %v1489
    %v1491 = vrot.slane %v1247, %v1490
    %v1492 = vlaneseq
    %v1493 = vshrl.u32 %v1492, 7
    %v1494 = vsub.s32 %v668, %v1493
    %v1495 = vrot.slane %v1250, %v1494
    %v1496 = vsel %vm673, %v1495, %v1491
    %v1497 = vlaneseq
    %v1498 = vshrl.u32 %v1497, 7
    %v1499 = vsub.s32 %v31, %v1498
    %v1500 = vrot.slane %v1253, %v1499
    %v1501 = vlaneseq
    %v1502 = vshrl.u32 %v1501, 7
    %v1503 = vsub.s32 %v668, %v1502
    %v1504 = vrot.slane %v1256, %v1503
    %v1505 = vsel %vm673, %v1504, %v1500
    %v1506 = vlaneseq
    %v1507 = vshrl.u32 %v1506, 7
    %v1508 = vsub.s32 %v31, %v1507
    %v1509 = vrot.slane %v1259, %v1508
    %v1510 = vlaneseq
    %v1511 = vshrl.u32 %v1510, 7
    %v1512 = vsub.s32 %v668, %v1511
    %v1513 = vrot.slane %v1262, %v1512
    %v1514 = vsel %vm673, %v1513, %v1509
    %v1515 = vlaneseq
    %v1516 = vshrl.u32 %v1515, 7
    %v1517 = vsub.s32 %v31, %v1516
    %v1518 = vrot.slane %v1265, %v1517
    %v1519 = vlaneseq
    %v1520 = vshrl.u32 %v1519, 7
    %v1521 = vsub.s32 %v668, %v1520
    %v1522 = vrot.slane %v1268, %v1521
    %v1523 = vsel %vm673, %v1522, %v1518
    %v1524 = vlaneseq
    %v1525 = vshrl.u32 %v1524, 7
    %v1526 = vsub.s32 %v31, %v1525
    %v1527 = vrot.slane %v1271, %v1526
    %v1528 = vlaneseq
    %v1529 = vshrl.u32 %v1528, 7
    %v1530 = vsub.s32 %v668, %v1529
    %v1531 = vrot.slane %v1274, %v1530
    %v1532 = vsel %vm673, %v1531, %v1527
    %v1533 = vlaneseq
    %v1534 = vshrl.u32 %v1533, 7
    %v1535 = vsub.s32 %v31, %v1534
    %v1536 = vrot.slane %v1277, %v1535
    %v1537 = vlaneseq
    %v1538 = vshrl.u32 %v1537, 7
    %v1539 = vsub.s32 %v668, %v1538
    %v1540 = vrot.slane %v1280, %v1539
    %v1541 = vsel %vm673, %v1540, %v1536
    %v1542 = vlaneseq
    %v1543 = vshrl.u32 %v1542, 7
    %v1544 = vsub.s32 %v31, %v1543
    %v1545 = vrot.slane %v1283, %v1544
    %v1546 = vlaneseq
    %v1547 = vshrl.u32 %v1546, 7
    %v1548 = vsub.s32 %v668, %v1547
    %v1549 = vrot.slane %v1286, %v1548
    %v1550 = vsel %vm673, %v1549, %v1545
    %v1551 = vlaneseq
    %v1552 = vshrl.u32 %v1551, 7
    %v1553 = vsub.s32 %v31, %v1552
    %v1554 = vrot.slane %v1289, %v1553
    %v1555 = vlaneseq
    %v1556 = vshrl.u32 %v1555, 7
    %v1557 = vsub.s32 %v668, %v1556
    %v1558 = vrot.slane %v1292, %v1557
    %v1559 = vsel %vm673, %v1558, %v1554
    %v1560 = vlaneseq
    %v1561 = vshrl.u32 %v1560, 7
    %v1562 = vsub.s32 %v31, %v1561
    %v1563 = vrot.slane %v1295, %v1562
    %v1564 = vlaneseq
    %v1565 = vshrl.u32 %v1564, 7
    %v1566 = vsub.s32 %v668, %v1565
    %v1567 = vrot.slane %v1298, %v1566
    %v1568 = vsel %vm673, %v1567, %v1563
    %v1569 = vlaneseq
    %v1570 = vshrl.u32 %v1569, 7
    %v1571 = vsub.s32 %v31, %v1570
    %v1572 = vrot.slane %v1301, %v1571
    %v1573 = vlaneseq
    %v1574 = vshrl.u32 %v1573, 7
    %v1575 = vsub.s32 %v668, %v1574
    %v1576 = vrot.slane %v1304, %v1575
    %v1577 = vsel %vm673, %v1576, %v1572
    %v1578 = vlaneseq
    %v1579 = vshrl.u32 %v1578, 7
    %v1580 = vsub.s32 %v31, %v1579
    %v1581 = vrot.slane %v1307, %v1580
    %v1582 = vlaneseq
    %v1583 = vshrl.u32 %v1582, 7
    %v1584 = vsub.s32 %v668, %v1583
    %v1585 = vrot.slane %v1310, %v1584
    %v1586 = vsel %vm673, %v1585, %v1581
    %v1587 = vlaneseq
    %v1588 = vshrl.u32 %v1587, 7
    %v1589 = vsub.s32 %v31, %v1588
    %v1590 = vrot.slane %v1313, %v1589
    %v1591 = vlaneseq
    %v1592 = vshrl.u32 %v1591, 7
    %v1593 = vsub.s32 %v668, %v1592
    %v1594 = vrot.slane %v1316, %v1593
    %v1595 = vsel %vm673, %v1594, %v1590
    %v1596 = vlaneseq
    %v1597 = vshrl.u32 %v1596, 7
    %v1598 = vsub.s32 %v31, %v1597
    %v1599 = vrot.slane %v1319, %v1598
    %v1600 = vlaneseq
    %v1601 = vshrl.u32 %v1600, 7
    %v1602 = vsub.s32 %v668, %v1601
    %v1603 = vrot.slane %v1322, %v1602
    %v1604 = vsel %vm673, %v1603, %v1599
    %v1605 = vlaneseq
    %v1606 = vshrl.u32 %v1605, 7
    %v1607 = vsub.s32 %v31, %v1606
    %v1608 = vrot.slane %v1325, %v1607
    %v1609 = vlaneseq
    %v1610 = vshrl.u32 %v1609, 7
    %v1611 = vsub.s32 %v668, %v1610
    %v1612 = vrot.slane %v1328, %v1611
    %v1613 = vsel %vm673, %v1612, %v1608
    %v1614 = vlaneseq
    %v1615 = vshrl.u32 %v1614, 7
    %v1616 = vsub.s32 %v31, %v1615
    %v1617 = vrot.slane %v1331, %v1616
    %v1618 = vlaneseq
    %v1619 = vshrl.u32 %v1618, 7
    %v1620 = vsub.s32 %v668, %v1619
    %v1621 = vrot.slane %v1334, %v1620
    %v1622 = vsel %vm673, %v1621, %v1617
    %v1623 = vsel %vm954, %v1352, %v1343
    %v1624 = vsel %vm956, %v1361, %v1623
    %v1625 = vsel %vm958, %v1370, %v1624
    %v1626 = vsel %vm960, %v1379, %v1625
    %v1627 = vsel %vm962, %v1388, %v1626
    %v1628 = vsel %vm964, %v1397, %v1627
    %v1629 = vsel %vm966, %v1406, %v1628
    %v1630 = vsel %vm954, %v1424, %v1415
    %v1631 = vsel %vm956, %v1433, %v1630
    %v1632 = vsel %vm958, %v1442, %v1631
    %v1633 = vsel %vm960, %v1451, %v1632
    %v1634 = vsel %vm962, %v1460, %v1633
    %v1635 = vsel %vm964, %v1469, %v1634
    %v1636 = vsel %vm966, %v1478, %v1635
    %v1637 = vsel %vm954, %v1496, %v1487
    %v1638 = vsel %vm956, %v1505, %v1637
    %v1639 = vsel %vm958, %v1514, %v1638
    %v1640 = vsel %vm960, %v1523, %v1639
    %v1641 = vsel %vm962, %v1532, %v1640
    %v1642 = vsel %vm964, %v1541, %v1641
    %v1643 = vsel %vm966, %v1550, %v1642
    %v1644 = vsel %vm954, %v1568, %v1559
    %v1645 = vsel %vm956, %v1577, %v1644
    %v1646 = vsel %vm958, %v1586, %v1645
    %v1647 = vsel %vm960, %v1595, %v1646
    %v1648 = vsel %vm962, %v1604, %v1647
    %v1649 = vsel %vm964, %v1613, %v1648
    %v1650 = vsel %vm966, %v1622, %v1649
    %v1655 = vsel %vm113, %v1629, 0.0
    %1656 = vadd.xlane.f32.xlu0 %v1655
    %v1657 = vpop.xlane.xlu0 %1656
    %v1658 = vsel %vm113, %v1636, 0.0
    %1659 = vadd.xlane.f32.xlu0 %v1658
    %v1660 = vpop.xlane.xlu0 %1659
    %v1661 = vsel %vm113, %v1643, 0.0
    %1662 = vadd.xlane.f32.xlu0 %v1661
    %v1663 = vpop.xlane.xlu0 %1662
    %v1664 = vsel %vm113, %v1650, 0.0
    %1665 = vadd.xlane.f32.xlu0 %v1664
    %v1666 = vpop.xlane.xlu0 %1665
    %vm1667 = vcmp.lt.s32.totalorder %v31, 7
    %vm1668 = vcmp.ge.s32.totalorder %v31, 9
    %v1669 = vsel %vm1667, 1, 0
    %vm1670 = vcmp.eq.s32.totalorder %v1669, 1
    %v1675 = vlaneseq
    %v1676 = vshrl.u32 %v1675, 7
    %v1677 = vsub.s32 %v31, %v1676
    %v1678 = vrot.slane %v995, %v1677
    %v1679 = vlaneseq
    %v1680 = vshrl.u32 %v1679, 7
    %v1681 = vsub.s32 %v668, %v1680
    %v1682 = vrot.slane %v998, %v1681
    %v1683 = vsel %vm673, %v1682, %v1678
    %v1684 = vlaneseq
    %v1685 = vshrl.u32 %v1684, 7
    %v1686 = vsub.s32 %v31, %v1685
    %v1687 = vrot.slane %v1001, %v1686
    %v1688 = vlaneseq
    %v1689 = vshrl.u32 %v1688, 7
    %v1690 = vsub.s32 %v668, %v1689
    %v1691 = vrot.slane %v1004, %v1690
    %v1692 = vsel %vm673, %v1691, %v1687
    %v1693 = vsel %vm954, %v1692, %v1683
    %v1695 = vsel %vm1670, %v1693, -inf
    %vm1696 = vcmask 123904
    %v1697 = vsel %vm1696, %v1695, -inf
    %1698 = vmax.xlane.f32.xlu0 %v1697
    %v1699 = vpop.xlane.xlu0 %1698
    %v1701 = vlaneseq
    %v1702 = vshrl.u32 %v1701, 7
    %v1703 = vsub.s32 0, %v1702
    %v1704 = vrot.slane %v1699, %v1703
    %v1705 = vlaneseq
    %v1706 = vshrl.u32 %v1705, 7
    %v1707 = vsub.s32 1, %v1706
    %v1708 = vrot.slane %v1699, %v1707
    %v1711 = vsub.f32 %v995, %v1704
    %v1712 = vsub.f32 %v998, %v1704
    %v1713 = vsub.f32 %v1001, %v1708
    %v1714 = vsub.f32 %v1004, %v1708
    %v1715 = vmul.f32 %v1711, 1.442695
    %v1716 = vpow.pop %v1715
    %v1717 = vmul.f32 %v1712, 1.442695
    %v1718 = vpow.pop %v1717
    %v1719 = vmul.f32 %v1713, 1.442695
    %v1720 = vpow.pop %v1719
    %v1721 = vmul.f32 %v1714, 1.442695
    %v1722 = vpow.pop %v1721
    %1727 = vset.pattern.permute.xlu0 0
    %1728 = vperm.xlu0 %1727, %v1716
    %v1729 = vpop.permute.xlu0 %1728
    %1730 = vset.pattern.permute.xlu0 0
    %1731 = vperm.xlu0 %1730, %v1718
    %v1732 = vpop.permute.xlu0 %1731
    %1733 = vset.pattern.permute.xlu0 0
    %1734 = vperm.xlu0 %1733, %v1720
    %v1735 = vpop.permute.xlu0 %1734
    %1736 = vset.pattern.permute.xlu0 0
    %1737 = vperm.xlu0 %1736, %v1722
    %v1738 = vpop.permute.xlu0 %1737
    %v1739 = vlaneseq
    %v1740 = vshrl.u32 %v1739, 7
    %v1741 = vsub.s32 %v31, %v1740
    %v1742 = vrot.slane %v1729, %v1741
    %v1743 = vlaneseq
    %v1744 = vshrl.u32 %v1743, 7
    %v1745 = vsub.s32 %v668, %v1744
    %v1746 = vrot.slane %v1732, %v1745
    %v1747 = vsel %vm673, %v1746, %v1742
    %v1748 = vlaneseq
    %v1749 = vshrl.u32 %v1748, 7
    %v1750 = vsub.s32 %v31, %v1749
    %v1751 = vrot.slane %v1735, %v1750
    %v1752 = vlaneseq
    %v1753 = vshrl.u32 %v1752, 7
    %v1754 = vsub.s32 %v668, %v1753
    %v1755 = vrot.slane %v1738, %v1754
    %v1756 = vsel %vm673, %v1755, %v1751
    %v1757 = vsel %vm954, %v1756, %v1747
    %v1759 = vsel %vm1670, %v1757, 0.0
    %v1760 = vsel %vm1696, %v1759, 0.0
    %1761 = vadd.xlane.f32.xlu0 %v1760
    %v1762 = vpop.xlane.xlu0 %1761
    %v1763 = vrcp.pop %v1762
    %v1764 = vmul.f32 %v1759, %v1763
    %v1765 = vsub.f32 1.0, %v995
    %v1766 = vsub.f32 1.0, %v998
    %v1767 = vsub.f32 1.0, %v1001
    %v1768 = vsub.f32 1.0, %v1004
    %v1769 = vsel %vm1668, 1, 0
    %vm1770 = vcmp.eq.s32.totalorder %v1769, 1
    %v1775 = vlaneseq
    %v1776 = vshrl.u32 %v1775, 7
    %v1777 = vsub.s32 %v31, %v1776
    %v1778 = vrot.slane %v1765, %v1777
    %v1779 = vlaneseq
    %v1780 = vshrl.u32 %v1779, 7
    %v1781 = vsub.s32 %v668, %v1780
    %v1782 = vrot.slane %v1766, %v1781
    %v1783 = vsel %vm673, %v1782, %v1778
    %v1784 = vlaneseq
    %v1785 = vshrl.u32 %v1784, 7
    %v1786 = vsub.s32 %v31, %v1785
    %v1787 = vrot.slane %v1767, %v1786
    %v1788 = vlaneseq
    %v1789 = vshrl.u32 %v1788, 7
    %v1790 = vsub.s32 %v668, %v1789
    %v1791 = vrot.slane %v1768, %v1790
    %v1792 = vsel %vm673, %v1791, %v1787
    %v1793 = vsel %vm954, %v1792, %v1783
    %v1795 = vsel %vm1770, %v1793, -inf
    %v1796 = vsel %vm1696, %v1795, -inf
    %1797 = vmax.xlane.f32.xlu0 %v1796
    %v1798 = vpop.xlane.xlu0 %1797
    %v1800 = vlaneseq
    %v1801 = vshrl.u32 %v1800, 7
    %v1802 = vsub.s32 0, %v1801
    %v1803 = vrot.slane %v1798, %v1802
    %v1804 = vlaneseq
    %v1805 = vshrl.u32 %v1804, 7
    %v1806 = vsub.s32 1, %v1805
    %v1807 = vrot.slane %v1798, %v1806
    %v1810 = vsub.f32 %v1765, %v1803
    %v1811 = vsub.f32 %v1766, %v1803
    %v1812 = vsub.f32 %v1767, %v1807
    %v1813 = vsub.f32 %v1768, %v1807
    %v1814 = vmul.f32 %v1810, 1.442695
    %v1815 = vpow.pop %v1814
    %v1816 = vmul.f32 %v1811, 1.442695
    %v1817 = vpow.pop %v1816
    %v1818 = vmul.f32 %v1812, 1.442695
    %v1819 = vpow.pop %v1818
    %v1820 = vmul.f32 %v1813, 1.442695
    %v1821 = vpow.pop %v1820
    %1826 = vset.pattern.permute.xlu0 0
    %1827 = vperm.xlu0 %1826, %v1815
    %v1828 = vpop.permute.xlu0 %1827
    %1829 = vset.pattern.permute.xlu0 0
    %1830 = vperm.xlu0 %1829, %v1817
    %v1831 = vpop.permute.xlu0 %1830
    %1832 = vset.pattern.permute.xlu0 0
    %1833 = vperm.xlu0 %1832, %v1819
    %v1834 = vpop.permute.xlu0 %1833
    %1835 = vset.pattern.permute.xlu0 0
    %1836 = vperm.xlu0 %1835, %v1821
    %v1837 = vpop.permute.xlu0 %1836
    %v1838 = vlaneseq
    %v1839 = vshrl.u32 %v1838, 7
    %v1840 = vsub.s32 %v31, %v1839
    %v1841 = vrot.slane %v1828, %v1840
    %v1842 = vlaneseq
    %v1843 = vshrl.u32 %v1842, 7
    %v1844 = vsub.s32 %v668, %v1843
    %v1845 = vrot.slane %v1831, %v1844
    %v1846 = vsel %vm673, %v1845, %v1841
    %v1847 = vlaneseq
    %v1848 = vshrl.u32 %v1847, 7
    %v1849 = vsub.s32 %v31, %v1848
    %v1850 = vrot.slane %v1834, %v1849
    %v1851 = vlaneseq
    %v1852 = vshrl.u32 %v1851, 7
    %v1853 = vsub.s32 %v668, %v1852
    %v1854 = vrot.slane %v1837, %v1853
    %v1855 = vsel %vm673, %v1854, %v1850
    %v1856 = vsel %vm954, %v1855, %v1846
    %v1858 = vsel %vm1770, %v1856, 0.0
    %v1859 = vsel %vm1696, %v1858, 0.0
    %1860 = vadd.xlane.f32.xlu0 %v1859
    %v1861 = vpop.xlane.xlu0 %1860
    %v1862 = vrcp.pop %v1861
    %v1863 = vmul.f32 %v1858, %v1862
    %v1864 = vsub.f32 %v1764, %v1863
    %1865 = vst.msk [vmem:[#allocation5] sm:$0x3] %vm1696, %v1864
    %v1866 = vadd.f32 %v1657, 0.5
    %v1867 = vadd.f32 %v1660, 0.5
    %v1868 = vadd.f32 %v1663, 0.5
    %v1869 = vadd.f32 %v1666, 0.5
    %v1870 = vcvt.f32.s32.to.zero.pseudo %v1866
    %v1871 = vcvt.f32.s32.to.zero.pseudo %v1867
    %v1872 = vcvt.f32.s32.to.zero.pseudo %v1868
    %v1873 = vcvt.f32.s32.to.zero.pseudo %v1869
    %v1874 = vlaneseq
    %v1875 = vshrl.u32 %v1874, 7
    %v1876 = vsub.s32 %v31, %v1875
    %v1877 = vrot.slane %v1870, %v1876
    %v1878 = vlaneseq
    %v1879 = vshrl.u32 %v1878, 7
    %v1880 = vsub.s32 %v668, %v1879
    %v1881 = vrot.slane %v1871, %v1880
    %v1882 = vsel %vm673, %v1881, %v1877
    %v1883 = vlaneseq
    %v1884 = vshrl.u32 %v1883, 7
    %v1885 = vsub.s32 %v31, %v1884
    %v1886 = vrot.slane %v1872, %v1885
    %v1887 = vlaneseq
    %v1888 = vshrl.u32 %v1887, 7
    %v1889 = vsub.s32 %v668, %v1888
    %v1890 = vrot.slane %v1873, %v1889
    %v1891 = vsel %vm673, %v1890, %v1886
    %v1892 = vsel %vm954, %v1891, %v1882
    %1893 = vst.msk [vmem:[#allocation6] sm:$0x3] %vm1696, %v1892
    // Predicated region
    $region10: #{tpu_custom_call.1} parent=1 // pred_check
      _
    $region11: #{tpu_custom_call.1} parent=1 // pred_check_branch
      %1895 = sbr.rel (0) target = $region13
    $region12: #{tpu_custom_call.1} parent=1 // pred_region
      %s1897 = ssub.s32 32, 32
      %1898 = vsyncadd [#allocation4], %s1897
      %s1900 = sshll.u32 [#allocation5], 4
      %s1901 = int_to_ptr.vmem [resolvable:$true] %s1900
      %1903 = dma.vmem_to_hbm [thread:$0]  %s1901, 32, %s1, [#allocation4]
    $region13: #{tpu_custom_call.1} parent=1 // pred_fallthru
      _
    // Predicated region
    $region14: #{tpu_custom_call.1} parent=1 // pred_check
      _
    $region15: #{tpu_custom_call.1} parent=1 // pred_check_branch
      %1905 = sbr.rel (0) target = $region17
    $region16: #{tpu_custom_call.1} parent=1 // pred_region
      %s1907 = ssub.s32 32, 32
      %1908 = vsyncadd [#allocation7], %s1907
      %s1910 = sshll.u32 [#allocation6], 4
      %s1911 = int_to_ptr.vmem [resolvable:$true] %s1910
      %1913 = dma.vmem_to_hbm [thread:$0]  %s1911, 32, %s2, [#allocation7]
    $region17: #{tpu_custom_call.1} parent=1 // pred_fallthru
      _
    // Predicated region
    $region18: #{tpu_custom_call.1} parent=1 // pred_check
      _
    $region19: #{tpu_custom_call.1} parent=1 // pred_check_branch
      %1915 = sbr.rel (0) target = $region21
    $region20: #{tpu_custom_call.1} parent=1 // pred_region
      %1916 = dma.done [#allocation4], 32
    $region21: #{tpu_custom_call.1} parent=1 // pred_fallthru
      _
    // Predicated region
    $region22: #{tpu_custom_call.1} parent=1 // pred_check
      _
    $region23: #{tpu_custom_call.1} parent=1 // pred_check_branch
      %1918 = sbr.rel (0) target = $region25
    $region24: #{tpu_custom_call.1} parent=1 // pred_region
      %1919 = dma.done [#allocation7], 32
    $region25: #{tpu_custom_call.1} parent=1 // pred_fallthru
      _
    %1920 = vsyncpa [#allocation3], 1
    %1921 = vsyncpa [#allocation4], 1
    %1922 = vsyncpa [#allocation7], 1

</llo_original>
